<compile_context>
chip_gen: v6e
topology: v6e:2x2x1
jax: 0.10.0
libtpu: 0.0.40
codegen_flags: <defaults>
</compile_context>

<pallas_src>
import functools

import jax
import jax.numpy as jnp
from jax.experimental import pallas as pl
from jax.experimental.pallas import tpu as pltpu


def _lstm_kernel(n_layers, hidden, seq_len, batch_pad, *refs):
    """refs = [x2d_bf16,
               (w_ihT_bf16, w_hhT_bf16, bias_f32) * n_layers,
               w_fcT_bf16, b_fc_f32,
               out_ref]"""
    H, S, B = hidden, seq_len, batch_pad

    x_ref = refs[0]                                   # (S*B, D_in) bf16, time-major rows
    layer_refs = refs[1:1 + 3 * n_layers]
    w_fc_ref = refs[1 + 3 * n_layers]                 # (H, out_dim) bf16
    b_fc_ref = refs[2 + 3 * n_layers]                 # (1, out_dim) f32
    out_ref = refs[3 + 3 * n_layers]                  # (B, out_dim) f32

    w_ihT = [layer_refs[3 * l + 0][...] for l in range(n_layers)]   # (D_l, 4H) bf16
    w_hhT = [layer_refs[3 * l + 1][...] for l in range(n_layers)]   # (H, 4H)   bf16
    bias = [layer_refs[3 * l + 2][...] for l in range(n_layers)]    # (1, 4H)   f32 (b_ih+b_hh)

    # Hoisted layer-0 input projection: one big matmul, entirely off the serial h->h chain.
    xp0 = jnp.dot(x_ref[...], w_ihT[0], preferred_element_type=jnp.float32) + bias[0]  # (S*B,4H)

    h = [jnp.zeros((B, H), jnp.float32) for _ in range(n_layers)]
    c = [jnp.zeros((B, H), jnp.float32) for _ in range(n_layers)]

    def cell_step(l, pre):
        # Recurrent matmul (bf16 operands, f32 accumulation) + gate math in f32.
        gates = pre + jnp.dot(h[l].astype(jnp.bfloat16), w_hhT[l],
                              preferred_element_type=jnp.float32)      # (B, 4H)
        # One sigmoid + one tanh over the full 128-lane gates vector, then slice.
        sg = jax.nn.sigmoid(gates)
        tg = jnp.tanh(gates)
        i_g = sg[:, 0 * H:1 * H]
        f_g = sg[:, 1 * H:2 * H]
        g_g = tg[:, 2 * H:3 * H]
        o_g = sg[:, 3 * H:4 * H]
        c_new = f_g * c[l] + i_g * g_g
        h_new = o_g * jnp.tanh(c_new)
        return h_new, c_new

    # Wavefront over (layer, time): wave w runs layer l at step t = w - l.  Steps on the
    # anti-diagonal are independent -> n_layers-way ILP for the latency-bound recurrence.
    for w in range(S + n_layers - 1):
        prev_h = list(h)                               # snapshot: per-layer h from previous wave
        for l in range(n_layers):
            t = w - l
            if not (0 <= t < S):
                continue
            if l == 0:
                pre = xp0[t * B:(t + 1) * B, :]        # aligned (8, 128) row block
            else:
                # Per-step input projection for deeper layers (input = prev layer's h at step t,
                # produced in the previous wave). Independent of this layer's recurrent matmul.
                pre = jnp.dot(prev_h[l - 1].astype(jnp.bfloat16), w_ihT[l],
                              preferred_element_type=jnp.float32) + bias[l]
            h[l], c[l] = cell_step(l, pre)

    # extract_tensor (last timestep of top layer) -> Flatten -> Linear.
    out_ref[...] = (jnp.dot(h[-1].astype(jnp.bfloat16), w_fc_ref[...],
                            preferred_element_type=jnp.float32) + b_fc_ref[...])


def lstm_forward(x, lstm_params, fc_params, *, hidden, pred_len, n_features_out):
    """x: (B, S, D_in) float32.  Returns (B, pred_len, n_features_out)."""
    n_layers = len(lstm_params)
    B, S, D_in = x.shape
    out_dim = pred_len * n_features_out

    # Pad batch to the f32 sublane tile so each timestep is one aligned (8, 128) vreg.
    B_pad = max(8, ((B + 7) // 8) * 8)

    # Time-major, batch-padded, flattened to 2D: per-timestep access in the kernel is a
    # static aligned row-block slice.  Cast to bf16 once here (MXU operand dtype).
    xt = jnp.transpose(x, (1, 0, 2)).astype(jnp.float32)          # (S, B, D_in)
    xt = jnp.pad(xt, ((0, 0), (0, B_pad - B), (0, 0)))            # (S, B_pad, D_in)
    x2d = xt.reshape(S * B_pad, D_in).astype(jnp.bfloat16)

    inputs = [x2d]
    for (w_ih, w_hh, b_ih, b_hh) in lstm_params:
        inputs += [w_ih.T.astype(jnp.bfloat16),
                   w_hh.T.astype(jnp.bfloat16),
                   (b_ih + b_hh).reshape(1, -1).astype(jnp.float32)]
    w_fc, b_fc = fc_params
    inputs += [w_fc.T.astype(jnp.bfloat16), b_fc.reshape(1, -1).astype(jnp.float32)]

    out = pl.pallas_call(
        functools.partial(_lstm_kernel, n_layers, hidden, S, B_pad),
        out_shape=jax.ShapeDtypeStruct((B_pad, out_dim), jnp.float32),
        in_specs=[pl.BlockSpec(memory_space=pltpu.MemorySpace.VMEM)] * len(inputs),
        out_specs=pl.BlockSpec(memory_space=pltpu.MemorySpace.VMEM),
    )(*inputs)
    return out[:B].reshape(B, pred_len, n_features_out)


def _reference_forward(x, lstm_params, fc_params, *, pred_len, n_features_out):
    """Pure-JAX reference mirroring nn.LSTM (eval) + last-step Linear.

    Matmul operands are cast to bf16 (f32 accumulation) to mirror the kernel's MXU precision;
    all state / elementwise math stays f32, exactly like the kernel.
    """
    def mm(a, b):
        return jnp.dot(a.astype(jnp.bfloat16), b.astype(jnp.bfloat16),
                       preferred_element_type=jnp.float32)

    seq = x.astype(jnp.float32)
    for (w_ih, w_hh, b_ih, b_hh) in lstm_params:
        H = w_hh.shape[1]
        B, S, _ = seq.shape
        h = jnp.zeros((B, H), jnp.float32)
        c = jnp.zeros((B, H), jnp.float32)
        outs = []
        for t in range(S):
            gates = mm(seq[:, t, :], w_ih.T) + mm(h, w_hh.T) + b_ih + b_hh
            i_g = jax.nn.sigmoid(gates[:, 0 * H:1 * H])
            f_g = jax.nn.sigmoid(gates[:, 1 * H:2 * H])
            g_g = jnp.tanh(gates[:, 2 * H:3 * H])
            o_g = jax.nn.sigmoid(gates[:, 3 * H:4 * H])
            c = f_g * c + i_g * g_g
            h = o_g * jnp.tanh(c)
            outs.append(h)
        seq = jnp.stack(outs, axis=1)
    w_fc, b_fc = fc_params
    y = mm(seq[:, -1, :], w_fc.T) + b_fc
    return y.reshape(x.shape[0], pred_len, n_features_out)


if __name__ == "__main__":
    # Config (mirrors the parameters dict of the PyTorch module).
    parameters = {
        "model": {"params": {"layers": 2, "units": 32, "dropout": 0.1}},
        "dataset": {"params": {"pred_len": 3, "seq_len": 8}},
    }
    n_layers = parameters["model"]["params"]["layers"]
    n_units = parameters["model"]["params"]["units"]
    pred_len = parameters["dataset"]["params"]["pred_len"]
    seq_len = parameters["dataset"]["params"]["seq_len"]
    n_features_in = 4
    n_features_out = 4
    batch = 2

    key = jax.random.PRNGKey(0)
    k_init = 1.0 / jnp.sqrt(jnp.float32(n_units))

    # Deterministic parameter init (PyTorch-style uniform(-1/sqrt(H), 1/sqrt(H))).
    lstm_params = []
    for l in range(n_layers):
        d_in = n_features_in if l == 0 else n_units
        key, k1, k2, k3, k4 = jax.random.split(key, 5)
        w_ih = jax.random.uniform(k1, (4 * n_units, d_in), jnp.float32, -k_init, k_init)
        w_hh = jax.random.uniform(k2, (4 * n_units, n_units), jnp.float32, -k_init, k_init)
        b_ih = jax.random.uniform(k3, (4 * n_units,), jnp.float32, -k_init, k_init)
        b_hh = jax.random.uniform(k4, (4 * n_units,), jnp.float32, -k_init, k_init)
        lstm_params.append((w_ih, w_hh, b_ih, b_hh))

    key, k5, k6, kx = jax.random.split(key, 4)
    w_fc = jax.random.uniform(k5, (n_features_out * pred_len, n_units), jnp.float32,
                              -k_init, k_init)
    b_fc = jax.random.uniform(k6, (n_features_out * pred_len,), jnp.float32,
                              -k_init, k_init)
    fc_params = (w_fc, b_fc)

    x = jax.random.normal(kx, (batch, seq_len, n_features_in), jnp.float32)

    y = lstm_forward(x, lstm_params, fc_params, hidden=n_units,
                     pred_len=pred_len, n_features_out=n_features_out)
    y = jax.block_until_ready(y)

    y_ref = _reference_forward(x, lstm_params, fc_params,
                               pred_len=pred_len, n_features_out=n_features_out)
    assert y.shape == (batch, pred_len, n_features_out)
    # Tolerance covers transcendental-implementation / summation-order deltas between the
    # Pallas kernel and the XLA reference (both use bf16 MXU operands, f32 everywhere else);
    # genuine logic bugs (wrong gate/slice/timestep) produce O(0.1) errors and are still caught.
    assert jnp.allclose(y, y_ref, atol=1e-2, rtol=1e-2), "mismatch vs reference"

    print("KERNEL_OK")
</pallas_src>

<mosaic_0001>
module attributes {stable_mosaic.version = 11 : i64} {
  func.func @_lstm_kernel(%arg0: memref<64x4xbf16, #tpu.memory_space<vmem>>, %arg1: memref<4x128xbf16, #tpu.memory_space<vmem>>, %arg2: memref<32x128xbf16, #tpu.memory_space<vmem>>, %arg3: memref<1x128xf32, #tpu.memory_space<vmem>>, %arg4: memref<32x128xbf16, #tpu.memory_space<vmem>>, %arg5: memref<32x128xbf16, #tpu.memory_space<vmem>>, %arg6: memref<1x128xf32, #tpu.memory_space<vmem>>, %arg7: memref<32x12xbf16, #tpu.memory_space<vmem>>, %arg8: memref<1x12xf32, #tpu.memory_space<vmem>>, %arg9: memref<8x12xf32, #tpu.memory_space<vmem>>) attributes {dimension_semantics = [], scalar_prefetch = 0 : i64, scratch_operands = 0 : i64, tpu.core_type = #tpu.core_type<tc>} {
    %c0 = arith.constant 0 : index
    %c0_0 = arith.constant 0 : index
    %0 = vector.load %arg1[%c0, %c0_0] : memref<4x128xbf16, #tpu.memory_space<vmem>>, vector<4x128xbf16>
    %c0_1 = arith.constant 0 : index
    %c0_2 = arith.constant 0 : index
    %1 = vector.load %arg4[%c0_1, %c0_2] : memref<32x128xbf16, #tpu.memory_space<vmem>>, vector<32x128xbf16>
    %c0_3 = arith.constant 0 : index
    %c0_4 = arith.constant 0 : index
    %2 = vector.load %arg2[%c0_3, %c0_4] : memref<32x128xbf16, #tpu.memory_space<vmem>>, vector<32x128xbf16>
    %c0_5 = arith.constant 0 : index
    %c0_6 = arith.constant 0 : index
    %3 = vector.load %arg5[%c0_5, %c0_6] : memref<32x128xbf16, #tpu.memory_space<vmem>>, vector<32x128xbf16>
    %c0_7 = arith.constant 0 : index
    %c0_8 = arith.constant 0 : index
    %4 = vector.load %arg3[%c0_7, %c0_8] : memref<1x128xf32, #tpu.memory_space<vmem>>, vector<1x128xf32>
    %c0_9 = arith.constant 0 : index
    %c0_10 = arith.constant 0 : index
    %5 = vector.load %arg6[%c0_9, %c0_10] : memref<1x128xf32, #tpu.memory_space<vmem>>, vector<1x128xf32>
    %c0_11 = arith.constant 0 : index
    %c0_12 = arith.constant 0 : index
    %6 = vector.load %arg0[%c0_11, %c0_12] : memref<64x4xbf16, #tpu.memory_space<vmem>>, vector<64x4xbf16>
    %cst = arith.constant dense<0.000000e+00> : vector<64x128xf32>
    %7 = tpu.matmul %6, %0, %cst {dimension_numbers = #tpu.dot_dimension_numbers<[1], [0], [0], [1], [0, 0, 1, 1], [], []>} : vector<64x4xbf16>, vector<4x128xbf16>, vector<64x128xf32> -> vector<64x128xf32>
    %8 = vector.broadcast %4 : vector<1x128xf32> to vector<64x128xf32>
    %9 = arith.addf %7, %8 : vector<64x128xf32>
    %cst_13 = arith.constant 0.000000e+00 : f32
    %10 = vector.broadcast %cst_13 : f32 to vector<8x32xf32>
    %cst_14 = arith.constant 0.000000e+00 : f32
    %11 = vector.broadcast %cst_14 : f32 to vector<8x32xf32>
    %cst_15 = arith.constant 0.000000e+00 : f32
    %12 = vector.broadcast %cst_15 : f32 to vector<8x32xf32>
    %cst_16 = arith.constant 0.000000e+00 : f32
    %13 = vector.broadcast %cst_16 : f32 to vector<8x32xf32>
    %14 = vector.extract_strided_slice %9 {offsets = [0, 0], sizes = [8, 128], strides = [1, 1]} : vector<64x128xf32> to vector<8x128xf32>
    %15 = arith.truncf %10 : vector<8x32xf32> to vector<8x32xbf16>
    %cst_17 = arith.constant dense<0.000000e+00> : vector<8x128xf32>
    %16 = tpu.matmul %15, %2, %cst_17 {dimension_numbers = #tpu.dot_dimension_numbers<[1], [0], [0], [1], [0, 0, 1, 1], [], []>} : vector<8x32xbf16>, vector<32x128xbf16>, vector<8x128xf32> -> vector<8x128xf32>
    %17 = arith.addf %14, %16 : vector<8x128xf32>
    %18 = arith.negf %17 : vector<8x128xf32>
    %19 = math.exp %18 : vector<8x128xf32>
    %cst_18 = arith.constant 1.000000e+00 : f32
    %20 = vector.broadcast %cst_18 : f32 to vector<8x128xf32>
    %21 = arith.addf %20, %19 : vector<8x128xf32>
    %22 = arith.divf %20, %21 : vector<8x128xf32>
    %23 = math.tanh %17 : vector<8x128xf32>
    %24 = vector.extract_strided_slice %22 {offsets = [0, 0], sizes = [8, 32], strides = [1, 1]} : vector<8x128xf32> to vector<8x32xf32>
    %25 = vector.extract_strided_slice %22 {offsets = [0, 32], sizes = [8, 32], strides = [1, 1]} : vector<8x128xf32> to vector<8x32xf32>
    %26 = vector.extract_strided_slice %23 {offsets = [0, 64], sizes = [8, 32], strides = [1, 1]} : vector<8x128xf32> to vector<8x32xf32>
    %27 = vector.extract_strided_slice %22 {offsets = [0, 96], sizes = [8, 32], strides = [1, 1]} : vector<8x128xf32> to vector<8x32xf32>
    %28 = arith.mulf %25, %12 : vector<8x32xf32>
    %29 = arith.mulf %24, %26 : vector<8x32xf32>
    %30 = arith.addf %28, %29 : vector<8x32xf32>
    %31 = math.tanh %30 : vector<8x32xf32>
    %32 = arith.mulf %27, %31 : vector<8x32xf32>
    %33 = vector.extract_strided_slice %9 {offsets = [8, 0], sizes = [8, 128], strides = [1, 1]} : vector<64x128xf32> to vector<8x128xf32>
    %34 = arith.truncf %32 : vector<8x32xf32> to vector<8x32xbf16>
    %cst_19 = arith.constant dense<0.000000e+00> : vector<8x128xf32>
    %35 = tpu.matmul %34, %2, %cst_19 {dimension_numbers = #tpu.dot_dimension_numbers<[1], [0], [0], [1], [0, 0, 1, 1], [], []>} : vector<8x32xbf16>, vector<32x128xbf16>, vector<8x128xf32> -> vector<8x128xf32>
    %36 = arith.addf %33, %35 : vector<8x128xf32>
    %37 = arith.negf %36 : vector<8x128xf32>
    %38 = math.exp %37 : vector<8x128xf32>
    %cst_20 = arith.constant 1.000000e+00 : f32
    %39 = vector.broadcast %cst_20 : f32 to vector<8x128xf32>
    %40 = arith.addf %39, %38 : vector<8x128xf32>
    %41 = arith.divf %39, %40 : vector<8x128xf32>
    %42 = math.tanh %36 : vector<8x128xf32>
    %43 = vector.extract_strided_slice %41 {offsets = [0, 0], sizes = [8, 32], strides = [1, 1]} : vector<8x128xf32> to vector<8x32xf32>
    %44 = vector.extract_strided_slice %41 {offsets = [0, 32], sizes = [8, 32], strides = [1, 1]} : vector<8x128xf32> to vector<8x32xf32>
    %45 = vector.extract_strided_slice %42 {offsets = [0, 64], sizes = [8, 32], strides = [1, 1]} : vector<8x128xf32> to vector<8x32xf32>
    %46 = vector.extract_strided_slice %41 {offsets = [0, 96], sizes = [8, 32], strides = [1, 1]} : vector<8x128xf32> to vector<8x32xf32>
    %47 = arith.mulf %44, %30 : vector<8x32xf32>
    %48 = arith.mulf %43, %45 : vector<8x32xf32>
    %49 = arith.addf %47, %48 : vector<8x32xf32>
    %50 = math.tanh %49 : vector<8x32xf32>
    %51 = arith.mulf %46, %50 : vector<8x32xf32>
    %52 = arith.truncf %32 : vector<8x32xf32> to vector<8x32xbf16>
    %cst_21 = arith.constant dense<0.000000e+00> : vector<8x128xf32>
    %53 = tpu.matmul %52, %1, %cst_21 {dimension_numbers = #tpu.dot_dimension_numbers<[1], [0], [0], [1], [0, 0, 1, 1], [], []>} : vector<8x32xbf16>, vector<32x128xbf16>, vector<8x128xf32> -> vector<8x128xf32>
    %54 = vector.broadcast %5 : vector<1x128xf32> to vector<8x128xf32>
    %55 = arith.addf %53, %54 : vector<8x128xf32>
    %56 = arith.truncf %11 : vector<8x32xf32> to vector<8x32xbf16>
    %cst_22 = arith.constant dense<0.000000e+00> : vector<8x128xf32>
    %57 = tpu.matmul %56, %3, %cst_22 {dimension_numbers = #tpu.dot_dimension_numbers<[1], [0], [0], [1], [0, 0, 1, 1], [], []>} : vector<8x32xbf16>, vector<32x128xbf16>, vector<8x128xf32> -> vector<8x128xf32>
    %58 = arith.addf %55, %57 : vector<8x128xf32>
    %59 = arith.negf %58 : vector<8x128xf32>
    %60 = math.exp %59 : vector<8x128xf32>
    %cst_23 = arith.constant 1.000000e+00 : f32
    %61 = vector.broadcast %cst_23 : f32 to vector<8x128xf32>
    %62 = arith.addf %61, %60 : vector<8x128xf32>
    %63 = arith.divf %61, %62 : vector<8x128xf32>
    %64 = math.tanh %58 : vector<8x128xf32>
    %65 = vector.extract_strided_slice %63 {offsets = [0, 0], sizes = [8, 32], strides = [1, 1]} : vector<8x128xf32> to vector<8x32xf32>
    %66 = vector.extract_strided_slice %63 {offsets = [0, 32], sizes = [8, 32], strides = [1, 1]} : vector<8x128xf32> to vector<8x32xf32>
    %67 = vector.extract_strided_slice %64 {offsets = [0, 64], sizes = [8, 32], strides = [1, 1]} : vector<8x128xf32> to vector<8x32xf32>
    %68 = vector.extract_strided_slice %63 {offsets = [0, 96], sizes = [8, 32], strides = [1, 1]} : vector<8x128xf32> to vector<8x32xf32>
    %69 = arith.mulf %66, %13 : vector<8x32xf32>
    %70 = arith.mulf %65, %67 : vector<8x32xf32>
    %71 = arith.addf %69, %70 : vector<8x32xf32>
    %72 = math.tanh %71 : vector<8x32xf32>
    %73 = arith.mulf %68, %72 : vector<8x32xf32>
    %74 = vector.extract_strided_slice %9 {offsets = [16, 0], sizes = [8, 128], strides = [1, 1]} : vector<64x128xf32> to vector<8x128xf32>
    %75 = arith.truncf %51 : vector<8x32xf32> to vector<8x32xbf16>
    %cst_24 = arith.constant dense<0.000000e+00> : vector<8x128xf32>
    %76 = tpu.matmul %75, %2, %cst_24 {dimension_numbers = #tpu.dot_dimension_numbers<[1], [0], [0], [1], [0, 0, 1, 1], [], []>} : vector<8x32xbf16>, vector<32x128xbf16>, vector<8x128xf32> -> vector<8x128xf32>
    %77 = arith.addf %74, %76 : vector<8x128xf32>
    %78 = arith.negf %77 : vector<8x128xf32>
    %79 = math.exp %78 : vector<8x128xf32>
    %cst_25 = arith.constant 1.000000e+00 : f32
    %80 = vector.broadcast %cst_25 : f32 to vector<8x128xf32>
    %81 = arith.addf %80, %79 : vector<8x128xf32>
    %82 = arith.divf %80, %81 : vector<8x128xf32>
    %83 = math.tanh %77 : vector<8x128xf32>
    %84 = vector.extract_strided_slice %82 {offsets = [0, 0], sizes = [8, 32], strides = [1, 1]} : vector<8x128xf32> to vector<8x32xf32>
    %85 = vector.extract_strided_slice %82 {offsets = [0, 32], sizes = [8, 32], strides = [1, 1]} : vector<8x128xf32> to vector<8x32xf32>
    %86 = vector.extract_strided_slice %83 {offsets = [0, 64], sizes = [8, 32], strides = [1, 1]} : vector<8x128xf32> to vector<8x32xf32>
    %87 = vector.extract_strided_slice %82 {offsets = [0, 96], sizes = [8, 32], strides = [1, 1]} : vector<8x128xf32> to vector<8x32xf32>
    %88 = arith.mulf %85, %49 : vector<8x32xf32>
    %89 = arith.mulf %84, %86 : vector<8x32xf32>
    %90 = arith.addf %88, %89 : vector<8x32xf32>
    %91 = math.tanh %90 : vector<8x32xf32>
    %92 = arith.mulf %87, %91 : vector<8x32xf32>
    %93 = arith.truncf %51 : vector<8x32xf32> to vector<8x32xbf16>
    %cst_26 = arith.constant dense<0.000000e+00> : vector<8x128xf32>
    %94 = tpu.matmul %93, %1, %cst_26 {dimension_numbers = #tpu.dot_dimension_numbers<[1], [0], [0], [1], [0, 0, 1, 1], [], []>} : vector<8x32xbf16>, vector<32x128xbf16>, vector<8x128xf32> -> vector<8x128xf32>
    %95 = vector.broadcast %5 : vector<1x128xf32> to vector<8x128xf32>
    %96 = arith.addf %94, %95 : vector<8x128xf32>
    %97 = arith.truncf %73 : vector<8x32xf32> to vector<8x32xbf16>
    %cst_27 = arith.constant dense<0.000000e+00> : vector<8x128xf32>
    %98 = tpu.matmul %97, %3, %cst_27 {dimension_numbers = #tpu.dot_dimension_numbers<[1], [0], [0], [1], [0, 0, 1, 1], [], []>} : vector<8x32xbf16>, vector<32x128xbf16>, vector<8x128xf32> -> vector<8x128xf32>
    %99 = arith.addf %96, %98 : vector<8x128xf32>
    %100 = arith.negf %99 : vector<8x128xf32>
    %101 = math.exp %100 : vector<8x128xf32>
    %cst_28 = arith.constant 1.000000e+00 : f32
    %102 = vector.broadcast %cst_28 : f32 to vector<8x128xf32>
    %103 = arith.addf %102, %101 : vector<8x128xf32>
    %104 = arith.divf %102, %103 : vector<8x128xf32>
    %105 = math.tanh %99 : vector<8x128xf32>
    %106 = vector.extract_strided_slice %104 {offsets = [0, 0], sizes = [8, 32], strides = [1, 1]} : vector<8x128xf32> to vector<8x32xf32>
    %107 = vector.extract_strided_slice %104 {offsets = [0, 32], sizes = [8, 32], strides = [1, 1]} : vector<8x128xf32> to vector<8x32xf32>
    %108 = vector.extract_strided_slice %105 {offsets = [0, 64], sizes = [8, 32], strides = [1, 1]} : vector<8x128xf32> to vector<8x32xf32>
    %109 = vector.extract_strided_slice %104 {offsets = [0, 96], sizes = [8, 32], strides = [1, 1]} : vector<8x128xf32> to vector<8x32xf32>
    %110 = arith.mulf %107, %71 : vector<8x32xf32>
    %111 = arith.mulf %106, %108 : vector<8x32xf32>
    %112 = arith.addf %110, %111 : vector<8x32xf32>
    %113 = math.tanh %112 : vector<8x32xf32>
    %114 = arith.mulf %109, %113 : vector<8x32xf32>
    %115 = vector.extract_strided_slice %9 {offsets = [24, 0], sizes = [8, 128], strides = [1, 1]} : vector<64x128xf32> to vector<8x128xf32>
    %116 = arith.truncf %92 : vector<8x32xf32> to vector<8x32xbf16>
    %cst_29 = arith.constant dense<0.000000e+00> : vector<8x128xf32>
    %117 = tpu.matmul %116, %2, %cst_29 {dimension_numbers = #tpu.dot_dimension_numbers<[1], [0], [0], [1], [0, 0, 1, 1], [], []>} : vector<8x32xbf16>, vector<32x128xbf16>, vector<8x128xf32> -> vector<8x128xf32>
    %118 = arith.addf %115, %117 : vector<8x128xf32>
    %119 = arith.negf %118 : vector<8x128xf32>
    %120 = math.exp %119 : vector<8x128xf32>
    %cst_30 = arith.constant 1.000000e+00 : f32
    %121 = vector.broadcast %cst_30 : f32 to vector<8x128xf32>
    %122 = arith.addf %121, %120 : vector<8x128xf32>
    %123 = arith.divf %121, %122 : vector<8x128xf32>
    %124 = math.tanh %118 : vector<8x128xf32>
    %125 = vector.extract_strided_slice %123 {offsets = [0, 0], sizes = [8, 32], strides = [1, 1]} : vector<8x128xf32> to vector<8x32xf32>
    %126 = vector.extract_strided_slice %123 {offsets = [0, 32], sizes = [8, 32], strides = [1, 1]} : vector<8x128xf32> to vector<8x32xf32>
    %127 = vector.extract_strided_slice %124 {offsets = [0, 64], sizes = [8, 32], strides = [1, 1]} : vector<8x128xf32> to vector<8x32xf32>
    %128 = vector.extract_strided_slice %123 {offsets = [0, 96], sizes = [8, 32], strides = [1, 1]} : vector<8x128xf32> to vector<8x32xf32>
    %129 = arith.mulf %126, %90 : vector<8x32xf32>
    %130 = arith.mulf %125, %127 : vector<8x32xf32>
    %131 = arith.addf %129, %130 : vector<8x32xf32>
    %132 = math.tanh %131 : vector<8x32xf32>
    %133 = arith.mulf %128, %132 : vector<8x32xf32>
    %134 = arith.truncf %92 : vector<8x32xf32> to vector<8x32xbf16>
    %cst_31 = arith.constant dense<0.000000e+00> : vector<8x128xf32>
    %135 = tpu.matmul %134, %1, %cst_31 {dimension_numbers = #tpu.dot_dimension_numbers<[1], [0], [0], [1], [0, 0, 1, 1], [], []>} : vector<8x32xbf16>, vector<32x128xbf16>, vector<8x128xf32> -> vector<8x128xf32>
    %136 = vector.broadcast %5 : vector<1x128xf32> to vector<8x128xf32>
    %137 = arith.addf %135, %136 : vector<8x128xf32>
    %138 = arith.truncf %114 : vector<8x32xf32> to vector<8x32xbf16>
    %cst_32 = arith.constant dense<0.000000e+00> : vector<8x128xf32>
    %139 = tpu.matmul %138, %3, %cst_32 {dimension_numbers = #tpu.dot_dimension_numbers<[1], [0], [0], [1], [0, 0, 1, 1], [], []>} : vector<8x32xbf16>, vector<32x128xbf16>, vector<8x128xf32> -> vector<8x128xf32>
    %140 = arith.addf %137, %139 : vector<8x128xf32>
    %141 = arith.negf %140 : vector<8x128xf32>
    %142 = math.exp %141 : vector<8x128xf32>
    %cst_33 = arith.constant 1.000000e+00 : f32
    %143 = vector.broadcast %cst_33 : f32 to vector<8x128xf32>
    %144 = arith.addf %143, %142 : vector<8x128xf32>
    %145 = arith.divf %143, %144 : vector<8x128xf32>
    %146 = math.tanh %140 : vector<8x128xf32>
    %147 = vector.extract_strided_slice %145 {offsets = [0, 0], sizes = [8, 32], strides = [1, 1]} : vector<8x128xf32> to vector<8x32xf32>
    %148 = vector.extract_strided_slice %145 {offsets = [0, 32], sizes = [8, 32], strides = [1, 1]} : vector<8x128xf32> to vector<8x32xf32>
    %149 = vector.extract_strided_slice %146 {offsets = [0, 64], sizes = [8, 32], strides = [1, 1]} : vector<8x128xf32> to vector<8x32xf32>
    %150 = vector.extract_strided_slice %145 {offsets = [0, 96], sizes = [8, 32], strides = [1, 1]} : vector<8x128xf32> to vector<8x32xf32>
    %151 = arith.mulf %148, %112 : vector<8x32xf32>
    %152 = arith.mulf %147, %149 : vector<8x32xf32>
    %153 = arith.addf %151, %152 : vector<8x32xf32>
    %154 = math.tanh %153 : vector<8x32xf32>
    %155 = arith.mulf %150, %154 : vector<8x32xf32>
    %156 = vector.extract_strided_slice %9 {offsets = [32, 0], sizes = [8, 128], strides = [1, 1]} : vector<64x128xf32> to vector<8x128xf32>
    %157 = arith.truncf %133 : vector<8x32xf32> to vector<8x32xbf16>
    %cst_34 = arith.constant dense<0.000000e+00> : vector<8x128xf32>
    %158 = tpu.matmul %157, %2, %cst_34 {dimension_numbers = #tpu.dot_dimension_numbers<[1], [0], [0], [1], [0, 0, 1, 1], [], []>} : vector<8x32xbf16>, vector<32x128xbf16>, vector<8x128xf32> -> vector<8x128xf32>
    %159 = arith.addf %156, %158 : vector<8x128xf32>
    %160 = arith.negf %159 : vector<8x128xf32>
    %161 = math.exp %160 : vector<8x128xf32>
    %cst_35 = arith.constant 1.000000e+00 : f32
    %162 = vector.broadcast %cst_35 : f32 to vector<8x128xf32>
    %163 = arith.addf %162, %161 : vector<8x128xf32>
    %164 = arith.divf %162, %163 : vector<8x128xf32>
    %165 = math.tanh %159 : vector<8x128xf32>
    %166 = vector.extract_strided_slice %164 {offsets = [0, 0], sizes = [8, 32], strides = [1, 1]} : vector<8x128xf32> to vector<8x32xf32>
    %167 = vector.extract_strided_slice %164 {offsets = [0, 32], sizes = [8, 32], strides = [1, 1]} : vector<8x128xf32> to vector<8x32xf32>
    %168 = vector.extract_strided_slice %165 {offsets = [0, 64], sizes = [8, 32], strides = [1, 1]} : vector<8x128xf32> to vector<8x32xf32>
    %169 = vector.extract_strided_slice %164 {offsets = [0, 96], sizes = [8, 32], strides = [1, 1]} : vector<8x128xf32> to vector<8x32xf32>
    %170 = arith.mulf %167, %131 : vector<8x32xf32>
    %171 = arith.mulf %166, %168 : vector<8x32xf32>
    %172 = arith.addf %170, %171 : vector<8x32xf32>
    %173 = math.tanh %172 : vector<8x32xf32>
    %174 = arith.mulf %169, %173 : vector<8x32xf32>
    %175 = arith.truncf %133 : vector<8x32xf32> to vector<8x32xbf16>
    %cst_36 = arith.constant dense<0.000000e+00> : vector<8x128xf32>
    %176 = tpu.matmul %175, %1, %cst_36 {dimension_numbers = #tpu.dot_dimension_numbers<[1], [0], [0], [1], [0, 0, 1, 1], [], []>} : vector<8x32xbf16>, vector<32x128xbf16>, vector<8x128xf32> -> vector<8x128xf32>
    %177 = vector.broadcast %5 : vector<1x128xf32> to vector<8x128xf32>
    %178 = arith.addf %176, %177 : vector<8x128xf32>
    %179 = arith.truncf %155 : vector<8x32xf32> to vector<8x32xbf16>
    %cst_37 = arith.constant dense<0.000000e+00> : vector<8x128xf32>
    %180 = tpu.matmul %179, %3, %cst_37 {dimension_numbers = #tpu.dot_dimension_numbers<[1], [0], [0], [1], [0, 0, 1, 1], [], []>} : vector<8x32xbf16>, vector<32x128xbf16>, vector<8x128xf32> -> vector<8x128xf32>
    %181 = arith.addf %178, %180 : vector<8x128xf32>
    %182 = arith.negf %181 : vector<8x128xf32>
    %183 = math.exp %182 : vector<8x128xf32>
    %cst_38 = arith.constant 1.000000e+00 : f32
    %184 = vector.broadcast %cst_38 : f32 to vector<8x128xf32>
    %185 = arith.addf %184, %183 : vector<8x128xf32>
    %186 = arith.divf %184, %185 : vector<8x128xf32>
    %187 = math.tanh %181 : vector<8x128xf32>
    %188 = vector.extract_strided_slice %186 {offsets = [0, 0], sizes = [8, 32], strides = [1, 1]} : vector<8x128xf32> to vector<8x32xf32>
    %189 = vector.extract_strided_slice %186 {offsets = [0, 32], sizes = [8, 32], strides = [1, 1]} : vector<8x128xf32> to vector<8x32xf32>
    %190 = vector.extract_strided_slice %187 {offsets = [0, 64], sizes = [8, 32], strides = [1, 1]} : vector<8x128xf32> to vector<8x32xf32>
    %191 = vector.extract_strided_slice %186 {offsets = [0, 96], sizes = [8, 32], strides = [1, 1]} : vector<8x128xf32> to vector<8x32xf32>
    %192 = arith.mulf %189, %153 : vector<8x32xf32>
    %193 = arith.mulf %188, %190 : vector<8x32xf32>
    %194 = arith.addf %192, %193 : vector<8x32xf32>
    %195 = math.tanh %194 : vector<8x32xf32>
    %196 = arith.mulf %191, %195 : vector<8x32xf32>
    %197 = vector.extract_strided_slice %9 {offsets = [40, 0], sizes = [8, 128], strides = [1, 1]} : vector<64x128xf32> to vector<8x128xf32>
    %198 = arith.truncf %174 : vector<8x32xf32> to vector<8x32xbf16>
    %cst_39 = arith.constant dense<0.000000e+00> : vector<8x128xf32>
    %199 = tpu.matmul %198, %2, %cst_39 {dimension_numbers = #tpu.dot_dimension_numbers<[1], [0], [0], [1], [0, 0, 1, 1], [], []>} : vector<8x32xbf16>, vector<32x128xbf16>, vector<8x128xf32> -> vector<8x128xf32>
    %200 = arith.addf %197, %199 : vector<8x128xf32>
    %201 = arith.negf %200 : vector<8x128xf32>
    %202 = math.exp %201 : vector<8x128xf32>
    %cst_40 = arith.constant 1.000000e+00 : f32
    %203 = vector.broadcast %cst_40 : f32 to vector<8x128xf32>
    %204 = arith.addf %203, %202 : vector<8x128xf32>
    %205 = arith.divf %203, %204 : vector<8x128xf32>
    %206 = math.tanh %200 : vector<8x128xf32>
    %207 = vector.extract_strided_slice %205 {offsets = [0, 0], sizes = [8, 32], strides = [1, 1]} : vector<8x128xf32> to vector<8x32xf32>
    %208 = vector.extract_strided_slice %205 {offsets = [0, 32], sizes = [8, 32], strides = [1, 1]} : vector<8x128xf32> to vector<8x32xf32>
    %209 = vector.extract_strided_slice %206 {offsets = [0, 64], sizes = [8, 32], strides = [1, 1]} : vector<8x128xf32> to vector<8x32xf32>
    %210 = vector.extract_strided_slice %205 {offsets = [0, 96], sizes = [8, 32], strides = [1, 1]} : vector<8x128xf32> to vector<8x32xf32>
    %211 = arith.mulf %208, %172 : vector<8x32xf32>
    %212 = arith.mulf %207, %209 : vector<8x32xf32>
    %213 = arith.addf %211, %212 : vector<8x32xf32>
    %214 = math.tanh %213 : vector<8x32xf32>
    %215 = arith.mulf %210, %214 : vector<8x32xf32>
    %216 = arith.truncf %174 : vector<8x32xf32> to vector<8x32xbf16>
    %cst_41 = arith.constant dense<0.000000e+00> : vector<8x128xf32>
    %217 = tpu.matmul %216, %1, %cst_41 {dimension_numbers = #tpu.dot_dimension_numbers<[1], [0], [0], [1], [0, 0, 1, 1], [], []>} : vector<8x32xbf16>, vector<32x128xbf16>, vector<8x128xf32> -> vector<8x128xf32>
    %218 = vector.broadcast %5 : vector<1x128xf32> to vector<8x128xf32>
    %219 = arith.addf %217, %218 : vector<8x128xf32>
    %220 = arith.truncf %196 : vector<8x32xf32> to vector<8x32xbf16>
    %cst_42 = arith.constant dense<0.000000e+00> : vector<8x128xf32>
    %221 = tpu.matmul %220, %3, %cst_42 {dimension_numbers = #tpu.dot_dimension_numbers<[1], [0], [0], [1], [0, 0, 1, 1], [], []>} : vector<8x32xbf16>, vector<32x128xbf16>, vector<8x128xf32> -> vector<8x128xf32>
    %222 = arith.addf %219, %221 : vector<8x128xf32>
    %223 = arith.negf %222 : vector<8x128xf32>
    %224 = math.exp %223 : vector<8x128xf32>
    %cst_43 = arith.constant 1.000000e+00 : f32
    %225 = vector.broadcast %cst_43 : f32 to vector<8x128xf32>
    %226 = arith.addf %225, %224 : vector<8x128xf32>
    %227 = arith.divf %225, %226 : vector<8x128xf32>
    %228 = math.tanh %222 : vector<8x128xf32>
    %229 = vector.extract_strided_slice %227 {offsets = [0, 0], sizes = [8, 32], strides = [1, 1]} : vector<8x128xf32> to vector<8x32xf32>
    %230 = vector.extract_strided_slice %227 {offsets = [0, 32], sizes = [8, 32], strides = [1, 1]} : vector<8x128xf32> to vector<8x32xf32>
    %231 = vector.extract_strided_slice %228 {offsets = [0, 64], sizes = [8, 32], strides = [1, 1]} : vector<8x128xf32> to vector<8x32xf32>
    %232 = vector.extract_strided_slice %227 {offsets = [0, 96], sizes = [8, 32], strides = [1, 1]} : vector<8x128xf32> to vector<8x32xf32>
    %233 = arith.mulf %230, %194 : vector<8x32xf32>
    %234 = arith.mulf %229, %231 : vector<8x32xf32>
    %235 = arith.addf %233, %234 : vector<8x32xf32>
    %236 = math.tanh %235 : vector<8x32xf32>
    %237 = arith.mulf %232, %236 : vector<8x32xf32>
    %238 = vector.extract_strided_slice %9 {offsets = [48, 0], sizes = [8, 128], strides = [1, 1]} : vector<64x128xf32> to vector<8x128xf32>
    %239 = arith.truncf %215 : vector<8x32xf32> to vector<8x32xbf16>
    %cst_44 = arith.constant dense<0.000000e+00> : vector<8x128xf32>
    %240 = tpu.matmul %239, %2, %cst_44 {dimension_numbers = #tpu.dot_dimension_numbers<[1], [0], [0], [1], [0, 0, 1, 1], [], []>} : vector<8x32xbf16>, vector<32x128xbf16>, vector<8x128xf32> -> vector<8x128xf32>
    %241 = arith.addf %238, %240 : vector<8x128xf32>
    %242 = arith.negf %241 : vector<8x128xf32>
    %243 = math.exp %242 : vector<8x128xf32>
    %cst_45 = arith.constant 1.000000e+00 : f32
    %244 = vector.broadcast %cst_45 : f32 to vector<8x128xf32>
    %245 = arith.addf %244, %243 : vector<8x128xf32>
    %246 = arith.divf %244, %245 : vector<8x128xf32>
    %247 = math.tanh %241 : vector<8x128xf32>
    %248 = vector.extract_strided_slice %246 {offsets = [0, 0], sizes = [8, 32], strides = [1, 1]} : vector<8x128xf32> to vector<8x32xf32>
    %249 = vector.extract_strided_slice %246 {offsets = [0, 32], sizes = [8, 32], strides = [1, 1]} : vector<8x128xf32> to vector<8x32xf32>
    %250 = vector.extract_strided_slice %247 {offsets = [0, 64], sizes = [8, 32], strides = [1, 1]} : vector<8x128xf32> to vector<8x32xf32>
    %251 = vector.extract_strided_slice %246 {offsets = [0, 96], sizes = [8, 32], strides = [1, 1]} : vector<8x128xf32> to vector<8x32xf32>
    %252 = arith.mulf %249, %213 : vector<8x32xf32>
    %253 = arith.mulf %248, %250 : vector<8x32xf32>
    %254 = arith.addf %252, %253 : vector<8x32xf32>
    %255 = math.tanh %254 : vector<8x32xf32>
    %256 = arith.mulf %251, %255 : vector<8x32xf32>
    %257 = arith.truncf %215 : vector<8x32xf32> to vector<8x32xbf16>
    %cst_46 = arith.constant dense<0.000000e+00> : vector<8x128xf32>
    %258 = tpu.matmul %257, %1, %cst_46 {dimension_numbers = #tpu.dot_dimension_numbers<[1], [0], [0], [1], [0, 0, 1, 1], [], []>} : vector<8x32xbf16>, vector<32x128xbf16>, vector<8x128xf32> -> vector<8x128xf32>
    %259 = vector.broadcast %5 : vector<1x128xf32> to vector<8x128xf32>
    %260 = arith.addf %258, %259 : vector<8x128xf32>
    %261 = arith.truncf %237 : vector<8x32xf32> to vector<8x32xbf16>
    %cst_47 = arith.constant dense<0.000000e+00> : vector<8x128xf32>
    %262 = tpu.matmul %261, %3, %cst_47 {dimension_numbers = #tpu.dot_dimension_numbers<[1], [0], [0], [1], [0, 0, 1, 1], [], []>} : vector<8x32xbf16>, vector<32x128xbf16>, vector<8x128xf32> -> vector<8x128xf32>
    %263 = arith.addf %260, %262 : vector<8x128xf32>
    %264 = arith.negf %263 : vector<8x128xf32>
    %265 = math.exp %264 : vector<8x128xf32>
    %cst_48 = arith.constant 1.000000e+00 : f32
    %266 = vector.broadcast %cst_48 : f32 to vector<8x128xf32>
    %267 = arith.addf %266, %265 : vector<8x128xf32>
    %268 = arith.divf %266, %267 : vector<8x128xf32>
    %269 = math.tanh %263 : vector<8x128xf32>
    %270 = vector.extract_strided_slice %268 {offsets = [0, 0], sizes = [8, 32], strides = [1, 1]} : vector<8x128xf32> to vector<8x32xf32>
    %271 = vector.extract_strided_slice %268 {offsets = [0, 32], sizes = [8, 32], strides = [1, 1]} : vector<8x128xf32> to vector<8x32xf32>
    %272 = vector.extract_strided_slice %269 {offsets = [0, 64], sizes = [8, 32], strides = [1, 1]} : vector<8x128xf32> to vector<8x32xf32>
    %273 = vector.extract_strided_slice %268 {offsets = [0, 96], sizes = [8, 32], strides = [1, 1]} : vector<8x128xf32> to vector<8x32xf32>
    %274 = arith.mulf %271, %235 : vector<8x32xf32>
    %275 = arith.mulf %270, %272 : vector<8x32xf32>
    %276 = arith.addf %274, %275 : vector<8x32xf32>
    %277 = math.tanh %276 : vector<8x32xf32>
    %278 = arith.mulf %273, %277 : vector<8x32xf32>
    %279 = vector.extract_strided_slice %9 {offsets = [56, 0], sizes = [8, 128], strides = [1, 1]} : vector<64x128xf32> to vector<8x128xf32>
    %280 = arith.truncf %256 : vector<8x32xf32> to vector<8x32xbf16>
    %cst_49 = arith.constant dense<0.000000e+00> : vector<8x128xf32>
    %281 = tpu.matmul %280, %2, %cst_49 {dimension_numbers = #tpu.dot_dimension_numbers<[1], [0], [0], [1], [0, 0, 1, 1], [], []>} : vector<8x32xbf16>, vector<32x128xbf16>, vector<8x128xf32> -> vector<8x128xf32>
    %282 = arith.addf %279, %281 : vector<8x128xf32>
    %283 = arith.negf %282 : vector<8x128xf32>
    %284 = math.exp %283 : vector<8x128xf32>
    %cst_50 = arith.constant 1.000000e+00 : f32
    %285 = vector.broadcast %cst_50 : f32 to vector<8x128xf32>
    %286 = arith.addf %285, %284 : vector<8x128xf32>
    %287 = arith.divf %285, %286 : vector<8x128xf32>
    %288 = math.tanh %282 : vector<8x128xf32>
    %289 = vector.extract_strided_slice %287 {offsets = [0, 0], sizes = [8, 32], strides = [1, 1]} : vector<8x128xf32> to vector<8x32xf32>
    %290 = vector.extract_strided_slice %287 {offsets = [0, 32], sizes = [8, 32], strides = [1, 1]} : vector<8x128xf32> to vector<8x32xf32>
    %291 = vector.extract_strided_slice %288 {offsets = [0, 64], sizes = [8, 32], strides = [1, 1]} : vector<8x128xf32> to vector<8x32xf32>
    %292 = vector.extract_strided_slice %287 {offsets = [0, 96], sizes = [8, 32], strides = [1, 1]} : vector<8x128xf32> to vector<8x32xf32>
    %293 = arith.mulf %290, %254 : vector<8x32xf32>
    %294 = arith.mulf %289, %291 : vector<8x32xf32>
    %295 = arith.addf %293, %294 : vector<8x32xf32>
    %296 = math.tanh %295 : vector<8x32xf32>
    %297 = arith.mulf %292, %296 : vector<8x32xf32>
    %298 = arith.truncf %256 : vector<8x32xf32> to vector<8x32xbf16>
    %cst_51 = arith.constant dense<0.000000e+00> : vector<8x128xf32>
    %299 = tpu.matmul %298, %1, %cst_51 {dimension_numbers = #tpu.dot_dimension_numbers<[1], [0], [0], [1], [0, 0, 1, 1], [], []>} : vector<8x32xbf16>, vector<32x128xbf16>, vector<8x128xf32> -> vector<8x128xf32>
    %300 = vector.broadcast %5 : vector<1x128xf32> to vector<8x128xf32>
    %301 = arith.addf %299, %300 : vector<8x128xf32>
    %302 = arith.truncf %278 : vector<8x32xf32> to vector<8x32xbf16>
    %cst_52 = arith.constant dense<0.000000e+00> : vector<8x128xf32>
    %303 = tpu.matmul %302, %3, %cst_52 {dimension_numbers = #tpu.dot_dimension_numbers<[1], [0], [0], [1], [0, 0, 1, 1], [], []>} : vector<8x32xbf16>, vector<32x128xbf16>, vector<8x128xf32> -> vector<8x128xf32>
    %304 = arith.addf %301, %303 : vector<8x128xf32>
    %305 = arith.negf %304 : vector<8x128xf32>
    %306 = math.exp %305 : vector<8x128xf32>
    %cst_53 = arith.constant 1.000000e+00 : f32
    %307 = vector.broadcast %cst_53 : f32 to vector<8x128xf32>
    %308 = arith.addf %307, %306 : vector<8x128xf32>
    %309 = arith.divf %307, %308 : vector<8x128xf32>
    %310 = math.tanh %304 : vector<8x128xf32>
    %311 = vector.extract_strided_slice %309 {offsets = [0, 0], sizes = [8, 32], strides = [1, 1]} : vector<8x128xf32> to vector<8x32xf32>
    %312 = vector.extract_strided_slice %309 {offsets = [0, 32], sizes = [8, 32], strides = [1, 1]} : vector<8x128xf32> to vector<8x32xf32>
    %313 = vector.extract_strided_slice %310 {offsets = [0, 64], sizes = [8, 32], strides = [1, 1]} : vector<8x128xf32> to vector<8x32xf32>
    %314 = vector.extract_strided_slice %309 {offsets = [0, 96], sizes = [8, 32], strides = [1, 1]} : vector<8x128xf32> to vector<8x32xf32>
    %315 = arith.mulf %312, %276 : vector<8x32xf32>
    %316 = arith.mulf %311, %313 : vector<8x32xf32>
    %317 = arith.addf %315, %316 : vector<8x32xf32>
    %318 = math.tanh %317 : vector<8x32xf32>
    %319 = arith.mulf %314, %318 : vector<8x32xf32>
    %320 = arith.truncf %297 : vector<8x32xf32> to vector<8x32xbf16>
    %cst_54 = arith.constant dense<0.000000e+00> : vector<8x128xf32>
    %321 = tpu.matmul %320, %1, %cst_54 {dimension_numbers = #tpu.dot_dimension_numbers<[1], [0], [0], [1], [0, 0, 1, 1], [], []>} : vector<8x32xbf16>, vector<32x128xbf16>, vector<8x128xf32> -> vector<8x128xf32>
    %322 = vector.broadcast %5 : vector<1x128xf32> to vector<8x128xf32>
    %323 = arith.addf %321, %322 : vector<8x128xf32>
    %324 = arith.truncf %319 : vector<8x32xf32> to vector<8x32xbf16>
    %cst_55 = arith.constant dense<0.000000e+00> : vector<8x128xf32>
    %325 = tpu.matmul %324, %3, %cst_55 {dimension_numbers = #tpu.dot_dimension_numbers<[1], [0], [0], [1], [0, 0, 1, 1], [], []>} : vector<8x32xbf16>, vector<32x128xbf16>, vector<8x128xf32> -> vector<8x128xf32>
    %326 = arith.addf %323, %325 : vector<8x128xf32>
    %327 = arith.negf %326 : vector<8x128xf32>
    %328 = math.exp %327 : vector<8x128xf32>
    %cst_56 = arith.constant 1.000000e+00 : f32
    %329 = vector.broadcast %cst_56 : f32 to vector<8x128xf32>
    %330 = arith.addf %329, %328 : vector<8x128xf32>
    %331 = arith.divf %329, %330 : vector<8x128xf32>
    %332 = math.tanh %326 : vector<8x128xf32>
    %333 = vector.extract_strided_slice %331 {offsets = [0, 0], sizes = [8, 32], strides = [1, 1]} : vector<8x128xf32> to vector<8x32xf32>
    %334 = vector.extract_strided_slice %331 {offsets = [0, 32], sizes = [8, 32], strides = [1, 1]} : vector<8x128xf32> to vector<8x32xf32>
    %335 = vector.extract_strided_slice %332 {offsets = [0, 64], sizes = [8, 32], strides = [1, 1]} : vector<8x128xf32> to vector<8x32xf32>
    %336 = vector.extract_strided_slice %331 {offsets = [0, 96], sizes = [8, 32], strides = [1, 1]} : vector<8x128xf32> to vector<8x32xf32>
    %337 = arith.mulf %334, %317 : vector<8x32xf32>
    %338 = arith.mulf %333, %335 : vector<8x32xf32>
    %339 = arith.addf %337, %338 : vector<8x32xf32>
    %340 = math.tanh %339 : vector<8x32xf32>
    %341 = arith.mulf %336, %340 : vector<8x32xf32>
    %342 = arith.truncf %341 : vector<8x32xf32> to vector<8x32xbf16>
    %c0_57 = arith.constant 0 : index
    %c0_58 = arith.constant 0 : index
    %343 = vector.load %arg7[%c0_57, %c0_58] : memref<32x12xbf16, #tpu.memory_space<vmem>>, vector<32x12xbf16>
    %cst_59 = arith.constant dense<0.000000e+00> : vector<8x12xf32>
    %344 = tpu.matmul %342, %343, %cst_59 {dimension_numbers = #tpu.dot_dimension_numbers<[1], [0], [0], [1], [0, 0, 1, 1], [], []>} : vector<8x32xbf16>, vector<32x12xbf16>, vector<8x12xf32> -> vector<8x12xf32>
    %c0_60 = arith.constant 0 : index
    %c0_61 = arith.constant 0 : index
    %345 = vector.load %arg8[%c0_60, %c0_61] : memref<1x12xf32, #tpu.memory_space<vmem>>, vector<1x12xf32>
    %346 = vector.broadcast %345 : vector<1x12xf32> to vector<8x12xf32>
    %347 = arith.addf %344, %346 : vector<8x12xf32>
    %c0_62 = arith.constant 0 : index
    %c0_63 = arith.constant 0 : index
    %348 = vector.load %arg9[%c0_62, %c0_63] : memref<8x12xf32, #tpu.memory_space<vmem>>, vector<8x12xf32>
    tpu.vector_store %arg9[%c0_62, %c0_63], %347 {strides = array<i32>} : memref<8x12xf32, #tpu.memory_space<vmem>>, vector<8x12xf32>,
    return
  }
}

</mosaic_0001>

<llo_original>
// kernel: tpu_custom_call.1
$region0: #{tpu_custom_call.1}
  #allocation0 [shape = 'u32[]', space=smem, size = 0x4, offset = 0x4, fixed_abs, tag = 'smem constant byte address 0x4 - core index']
  #allocation1 [shape = 'u32[144,128]{1,0:T(1,128)}', space=vmem, size = 0x12000, scoped, tag = 'internal scratch']
  %s0 = inlined_call_operand.vmem [shape: bf16[64,4], index: 0, kind: input, shape index: {}]
  %s1 = inlined_call_operand.vmem [shape: bf16[4,128], index: 1, kind: input, shape index: {}]
  %s2 = inlined_call_operand.vmem [shape: bf16[32,128], index: 2, kind: input, shape index: {}]
  %s3 = inlined_call_operand.vmem [shape: f32[1,128], index: 3, kind: input, shape index: {}]
  %s4 = inlined_call_operand.vmem [shape: bf16[32,128], index: 4, kind: input, shape index: {}]
  %s5 = inlined_call_operand.vmem [shape: bf16[32,128], index: 5, kind: input, shape index: {}]
  %s6 = inlined_call_operand.vmem [shape: f32[1,128], index: 6, kind: input, shape index: {}]
  %s7 = inlined_call_operand.vmem [shape: bf16[32,12], index: 7, kind: input, shape index: {}]
  %s8 = inlined_call_operand.vmem [shape: f32[1,12], index: 8, kind: input, shape index: {}]
  %s9 = inlined_call_operand.hbm [shape: f32[8,12], index: 9, kind: output, shape index: {}]
  %s10 = sld [smem:[#allocation0]]
  $region46: #{tpu_custom_call.1} parent=0
    _
  %s12 = ssub.s32 1, %s10
  %s13 = scalar_select 0, %s12, %s10
  $region1: #{tpu_custom_call.1} parent=0
    #allocation2 [shape = 'u8[4096]{0}', space=vmem, size = 0x1000, scoped, tag = 'output window, operand 0, single buffered']
    #allocation3 [shape = 's32[1]{0}', space=sflag, size = 0x4, scoped, tag = 'scoped memory for tpu_custom_call.1']
    %14 = vsyncpa [#allocation3], 0
    // Predicated region
    $region2: #{tpu_custom_call.1} parent=1 // pred_check
      _
    $region3: #{tpu_custom_call.1} parent=1 // pred_check_branch
      %16 = sbr.rel (0) target = $region5
    $region4: #{tpu_custom_call.1} parent=1 // pred_region
      _
    $region5: #{tpu_custom_call.1} parent=1 // pred_fallthru
      _
    // Predicated region
    $region6: #{tpu_custom_call.1} parent=1 // pred_check
      _
    $region7: #{tpu_custom_call.1} parent=1 // pred_check_branch
      %18 = sbr.rel (0) target = $region9
    $region8: #{tpu_custom_call.1} parent=1 // pred_region
      _
    $region9: #{tpu_custom_call.1} parent=1 // pred_fallthru
      _
    // Predicated region
    $region10: #{tpu_custom_call.1} parent=1 // pred_check
      _
    $region11: #{tpu_custom_call.1} parent=1 // pred_check_branch
      %20 = sbr.rel (0) target = $region13
    $region12: #{tpu_custom_call.1} parent=1 // pred_region
      _
    $region13: #{tpu_custom_call.1} parent=1 // pred_fallthru
      _
    // Predicated region
    $region14: #{tpu_custom_call.1} parent=1 // pred_check
      _
    $region15: #{tpu_custom_call.1} parent=1 // pred_check_branch
      %22 = sbr.rel (0) target = $region17
    $region16: #{tpu_custom_call.1} parent=1 // pred_region
      _
    $region17: #{tpu_custom_call.1} parent=1 // pred_fallthru
      _
    // Predicated region
    $region18: #{tpu_custom_call.1} parent=1 // pred_check
      _
    $region19: #{tpu_custom_call.1} parent=1 // pred_check_branch
      %24 = sbr.rel (0) target = $region21
    $region20: #{tpu_custom_call.1} parent=1 // pred_region
      _
    $region21: #{tpu_custom_call.1} parent=1 // pred_fallthru
      _
    // Predicated region
    $region22: #{tpu_custom_call.1} parent=1 // pred_check
      _
    $region23: #{tpu_custom_call.1} parent=1 // pred_check_branch
      %26 = sbr.rel (0) target = $region25
    $region24: #{tpu_custom_call.1} parent=1 // pred_region
      _
    $region25: #{tpu_custom_call.1} parent=1 // pred_fallthru
      _
    // Predicated region
    $region26: #{tpu_custom_call.1} parent=1 // pred_check
      _
    $region27: #{tpu_custom_call.1} parent=1 // pred_check_branch
      %28 = sbr.rel (0) target = $region29
    $region28: #{tpu_custom_call.1} parent=1 // pred_region
      _
    $region29: #{tpu_custom_call.1} parent=1 // pred_fallthru
      _
    // Predicated region
    $region30: #{tpu_custom_call.1} parent=1 // pred_check
      _
    $region31: #{tpu_custom_call.1} parent=1 // pred_check_branch
      %30 = sbr.rel (0) target = $region33
    $region32: #{tpu_custom_call.1} parent=1 // pred_region
      _
    $region33: #{tpu_custom_call.1} parent=1 // pred_fallthru
      _
    // Predicated region
    $region34: #{tpu_custom_call.1} parent=1 // pred_check
      _
    $region35: #{tpu_custom_call.1} parent=1 // pred_check_branch
      %32 = sbr.rel (0) target = $region37
    $region36: #{tpu_custom_call.1} parent=1 // pred_region
      _
    $region37: #{tpu_custom_call.1} parent=1 // pred_fallthru
      _
    %v34 = vld [vmem:[%s1] sm:$0x3]
    %v35 = vld [vmem:[%s4] sm:$0xf]
    %v36 = vld [vmem:[%s4 + $0x4] sm:$0xf]
    %v37 = vld [vmem:[%s4 + $0x8] sm:$0xf]
    %v38 = vld [vmem:[%s4 + $0xc] sm:$0xf]
    %v39 = vld [vmem:[%s2] sm:$0xf]
    %v40 = vld [vmem:[%s2 + $0x4] sm:$0xf]
    %v41 = vld [vmem:[%s2 + $0x8] sm:$0xf]
    %v42 = vld [vmem:[%s2 + $0xc] sm:$0xf]
    %v43 = vld [vmem:[%s5] sm:$0xf]
    %v44 = vld [vmem:[%s5 + $0x4] sm:$0xf]
    %v45 = vld [vmem:[%s5 + $0x8] sm:$0xf]
    %v46 = vld [vmem:[%s5 + $0xc] sm:$0xf]
    %v47 = vld [vmem:[%s3] sm:$0x1]
    %v48 = vld [vmem:[%s6] sm:$0x1]
    %v49 = vld [vmem:[%s0] sm:$0xf]
    %v50 = vld [vmem:[%s0 + $0x4] sm:$0xf]
    %v51 = vld [vmem:[%s0 + $0x8] sm:$0xf]
    %v52 = vld [vmem:[%s0 + $0xc] sm:$0xf]
    %v53 = vld [vmem:[%s0 + $0x10] sm:$0xf]
    %v54 = vld [vmem:[%s0 + $0x14] sm:$0xf]
    %v55 = vld [vmem:[%s0 + $0x18] sm:$0xf]
    %v56 = vld [vmem:[%s0 + $0x1c] sm:$0xf]
    %v58 = vlaneseq
    %v59 = vshrl.u32 %v58, 7
    %v60 = vsub.s32 0, %v59
    %v61 = vrot.slane %v47, %v60
    %v71 = vunpack.c.l.b16 %v49
    %v72 = vunpack.c.l.b16 %v50
    %v73 = vunpack.c.l.b16 %v51
    %v74 = vunpack.c.l.b16 %v52
    %v75 = vunpack.c.l.b16 %v53
    %v76 = vunpack.c.l.b16 %v54
    %v77 = vunpack.c.l.b16 %v55
    %v78 = vunpack.c.l.b16 %v56
    %v79 = vpack.c.b16 %v72, %v71
    %v80 = vpack.c.b16 %v74, %v73
    %v81 = vpack.c.b16 %v76, %v75
    %v82 = vpack.c.b16 %v78, %v77
    %vm83 = vcmask 31744
    %v85 = vsel %vm83, %v79, 0
    %v88 = vsel %vm83, %v80, 0
    %v91 = vsel %vm83, %v81, 0
    %v94 = vsel %vm83, %v82, 0
    %vm96 = vcmask 1041408
    %v98 = vsel %vm96, %v34, 0
    %100 = vmatprep.subr.bf16.mxu0 0
    %101 = vmatpush1.bf16.msra.mxu0 0
    %102 = vmatprep.subr.bf16.mxu0 0
    %103 = vmatpush1.bf16.msra.mxu0 0
    %104 = vmatprep.subr.bf16.mxu0 0
    %105 = vmatpush1.bf16.msra.mxu0 0
    %106 = vmatprep.subr.bf16.mxu0 0
    %107 = vmatpush1.bf16.msra.mxu0 0
    %108 = vmatprep.subr.bf16.mxu0 0
    %109 = vmatpush1.bf16.msra.mxu0 0
    %110 = vmatprep.subr.bf16.mxu0 0
    %111 = vmatpush1.bf16.msra.mxu0 0
    %112 = vmatprep.subr.bf16.mxu0 0
    %113 = vmatpush1.bf16.msra.mxu0 0
    %114 = vmatprep.subr.bf16.mxu0 0
    %115 = vmatpush1.bf16.msra.mxu0 %v98
    %116 = vmatprep.subr.bf16.mxu0 0
    %117 = vmatpush2.bf16.msra.mxu0 0
    %118 = vmatprep.subr.bf16.mxu0 0
    %119 = vmatpush2.bf16.msra.mxu0 0
    %120 = vmatprep.subr.bf16.mxu0 0
    %121 = vmatpush2.bf16.msra.mxu0 0
    %122 = vmatprep.subr.bf16.mxu0 0
    %123 = vmatpush2.bf16.msra.mxu0 0
    %124 = vmatprep.subr.bf16.mxu0 0
    %125 = vmatpush2.bf16.msra.mxu0 0
    %126 = vmatprep.subr.bf16.mxu0 0
    %127 = vmatpush2.bf16.msra.mxu0 0
    %128 = vmatprep.subr.bf16.mxu0 0
    %129 = vmatpush2.bf16.msra.mxu0 0
    %130 = vmatprep.subr.bf16.mxu0 0
    %131 = vmatpush2.bf16.msra.mxu0 0
    %132 = vmatprep.mubr.bf16.mxu0 0
    %133 = vmatmul.mubr.bf16.gmra.mxu0 %v85
    %v134 = vpop.f32.mrf.mxu0
    %v135 = vadd.f32 %v61, %v134
    %v136 = vpop.f32.mrf.mxu0
    %v137 = vpop.f32.mrf.mxu0
    %v138 = vadd.f32 %v61, %v137
    %v139 = vpop.f32.mrf.mxu0
    %140 = vmatprep.mubr.bf16.mxu0 0
    %141 = vmatmul.mubr.bf16.gmra.mxu0 %v88
    %v142 = vpop.f32.mrf.mxu0
    %v143 = vadd.f32 %v61, %v142
    %v144 = vpop.f32.mrf.mxu0
    %v145 = vpop.f32.mrf.mxu0
    %v146 = vadd.f32 %v61, %v145
    %v147 = vpop.f32.mrf.mxu0
    %148 = vmatprep.mubr.bf16.mxu0 0
    %149 = vmatmul.mubr.bf16.gmra.mxu0 %v91
    %v150 = vpop.f32.mrf.mxu0
    %v151 = vadd.f32 %v61, %v150
    %v152 = vpop.f32.mrf.mxu0
    %v153 = vpop.f32.mrf.mxu0
    %v154 = vadd.f32 %v61, %v153
    %v155 = vpop.f32.mrf.mxu0
    %156 = vmatprep.mubr.bf16.mxu0 0
    %157 = vmatmul.mubr.bf16.gmra.mxu0 %v94
    %v158 = vpop.f32.mrf.mxu0
    %v159 = vadd.f32 %v61, %v158
    %v160 = vpop.f32.mrf.mxu0
    %v161 = vpop.f32.mrf.mxu0
    %v162 = vadd.f32 %v61, %v161
    %v163 = vpop.f32.mrf.mxu0
    %164 = vdwg.mxu0
    %v169 = vunpack.c.l.b16 %v39
    %v170 = vunpack.c.l.b16 %v40
    %v171 = vunpack.c.l.b16 %v41
    %v172 = vunpack.c.l.b16 %v42
    %v173 = vpack.c.b16 %v170, %v169
    %v174 = vpack.c.b16 %v172, %v171
    %vm177 = vcmask 261120
    %v179 = vsel %vm177, 0, 0
    %181 = vmatprep.subr.bf16.mxu0 0
    %182 = vmatpush1.bf16.msra.mxu0 0
    %183 = vmatprep.subr.bf16.mxu0 0
    %184 = vmatpush1.bf16.msra.mxu0 0
    %185 = vmatprep.subr.bf16.mxu0 0
    %186 = vmatpush1.bf16.msra.mxu0 0
    %187 = vmatprep.subr.bf16.mxu0 0
    %188 = vmatpush1.bf16.msra.mxu0 0
    %189 = vmatprep.subr.bf16.mxu0 0
    %190 = vmatpush1.bf16.msra.mxu0 0
    %191 = vmatprep.subr.bf16.mxu0 0
    %192 = vmatpush1.bf16.msra.mxu0 0
    %193 = vmatprep.subr.bf16.mxu0 0
    %194 = vmatpush1.bf16.msra.mxu0 %v174
    %195 = vmatprep.subr.bf16.mxu0 0
    %196 = vmatpush1.bf16.msra.mxu0 %v173
    %197 = vmatprep.subr.bf16.mxu0 0
    %198 = vmatpush2.bf16.msra.mxu0 0
    %199 = vmatprep.subr.bf16.mxu0 0
    %200 = vmatpush2.bf16.msra.mxu0 0
    %201 = vmatprep.subr.bf16.mxu0 0
    %202 = vmatpush2.bf16.msra.mxu0 0
    %203 = vmatprep.subr.bf16.mxu0 0
    %204 = vmatpush2.bf16.msra.mxu0 0
    %205 = vmatprep.subr.bf16.mxu0 0
    %206 = vmatpush2.bf16.msra.mxu0 0
    %207 = vmatprep.subr.bf16.mxu0 0
    %208 = vmatpush2.bf16.msra.mxu0 0
    %209 = vmatprep.subr.bf16.mxu0 0
    %210 = vmatpush2.bf16.msra.mxu0 0
    %211 = vmatprep.subr.bf16.mxu0 0
    %212 = vmatpush2.bf16.msra.mxu0 0
    %213 = vmatprep.mubr.bf16.mxu0 0
    %214 = vmatmul.mubr.bf16.gmra.mxu0 %v179
    %v215 = vpop.f32.mrf.mxu0
    %v216 = vadd.f32 0.0, %v215
    %v217 = vpop.f32.mrf.mxu0
    %v218 = vpop.f32.mrf.mxu0
    %v219 = vpop.f32.mrf.mxu0
    %220 = vdwg.mxu0
    %v221 = vadd.f32 %v135, %v216
    %v222 = vxor.u32 %v221, 2147483648
    %v223 = vmul.f32 %v222, 1.442695
    %v224 = vpow.pop %v223
    %v225 = vadd.f32 %v224, 1.0
    %v226 = vrcp.pop %v225
    %v227 = vmul.f32 1.0, %v226
    %v228 = vtanh.pop %v221
    %v229 = vmul.f32 %v227, 0.0
    %231 = vrot.lane.b32.xlu0 %v228, 64
    %v232 = vpop.permute.xlu0 %231
    %v234 = vmul.f32 %v227, %v232
    %236 = vrot.lane.b32.xlu0 %v234, 32
    %v237 = vpop.permute.xlu0 %236
    %v239 = vadd.f32 %v229, %v237
    %v240 = vtanh.pop %v239
    %242 = vrot.lane.b32.xlu0 %v240, 64
    %v243 = vpop.permute.xlu0 %242
    %v245 = vmul.f32 %v227, %v243
    %v246 = vpack.c.bf16 %v245, %v245
    %248 = vrot.lane.b32.xlu0 %v246, 32
    %v249 = vpop.permute.xlu0 %248
    %v251 = vsel %vm177, %v249, 0
    %253 = vmatprep.subr.bf16.mxu0 0
    %254 = vmatpush1.bf16.msra.mxu0 0
    %255 = vmatprep.subr.bf16.mxu0 0
    %256 = vmatpush1.bf16.msra.mxu0 0
    %257 = vmatprep.subr.bf16.mxu0 0
    %258 = vmatpush1.bf16.msra.mxu0 0
    %259 = vmatprep.subr.bf16.mxu0 0
    %260 = vmatpush1.bf16.msra.mxu0 0
    %261 = vmatprep.subr.bf16.mxu0 0
    %262 = vmatpush1.bf16.msra.mxu0 0
    %263 = vmatprep.subr.bf16.mxu0 0
    %264 = vmatpush1.bf16.msra.mxu0 0
    %265 = vmatprep.subr.bf16.mxu0 0
    %266 = vmatpush1.bf16.msra.mxu0 %v174
    %267 = vmatprep.subr.bf16.mxu0 0
    %268 = vmatpush1.bf16.msra.mxu0 %v173
    %269 = vmatprep.subr.bf16.mxu0 0
    %270 = vmatpush2.bf16.msra.mxu0 0
    %271 = vmatprep.subr.bf16.mxu0 0
    %272 = vmatpush2.bf16.msra.mxu0 0
    %273 = vmatprep.subr.bf16.mxu0 0
    %274 = vmatpush2.bf16.msra.mxu0 0
    %275 = vmatprep.subr.bf16.mxu0 0
    %276 = vmatpush2.bf16.msra.mxu0 0
    %277 = vmatprep.subr.bf16.mxu0 0
    %278 = vmatpush2.bf16.msra.mxu0 0
    %279 = vmatprep.subr.bf16.mxu0 0
    %280 = vmatpush2.bf16.msra.mxu0 0
    %281 = vmatprep.subr.bf16.mxu0 0
    %282 = vmatpush2.bf16.msra.mxu0 0
    %283 = vmatprep.subr.bf16.mxu0 0
    %284 = vmatpush2.bf16.msra.mxu0 0
    %285 = vmatprep.mubr.bf16.mxu0 0
    %286 = vmatmul.mubr.bf16.gmra.mxu0 %v251
    %v287 = vpop.f32.mrf.mxu0
    %v288 = vadd.f32 0.0, %v287
    %v289 = vpop.f32.mrf.mxu0
    %v290 = vpop.f32.mrf.mxu0
    %v291 = vpop.f32.mrf.mxu0
    %292 = vdwg.mxu0
    %v293 = vadd.f32 %v138, %v288
    %v294 = vxor.u32 %v293, 2147483648
    %v295 = vmul.f32 %v294, 1.442695
    %v296 = vpow.pop %v295
    %v297 = vadd.f32 %v296, 1.0
    %v298 = vrcp.pop %v297
    %v299 = vmul.f32 1.0, %v298
    %v300 = vtanh.pop %v293
    %v301 = vmul.f32 %v299, %v239
    %303 = vrot.lane.b32.xlu0 %v300, 64
    %v304 = vpop.permute.xlu0 %303
    %v306 = vmul.f32 %v299, %v304
    %308 = vrot.lane.b32.xlu0 %v306, 32
    %v309 = vpop.permute.xlu0 %308
    %v311 = vadd.f32 %v301, %v309
    %v312 = vtanh.pop %v311
    %314 = vrot.lane.b32.xlu0 %v312, 64
    %v315 = vpop.permute.xlu0 %314
    %v317 = vmul.f32 %v299, %v315
    %v319 = vlaneseq
    %v320 = vshrl.u32 %v319, 7
    %v321 = vsub.s32 0, %v320
    %v322 = vrot.slane %v48, %v321
    %v328 = vunpack.c.l.b16 %v35
    %v329 = vunpack.c.l.b16 %v36
    %v330 = vunpack.c.l.b16 %v37
    %v331 = vunpack.c.l.b16 %v38
    %v332 = vpack.c.b16 %v329, %v328
    %v333 = vpack.c.b16 %v331, %v330
    %336 = vmatprep.subr.bf16.mxu0 0
    %337 = vmatpush1.bf16.msra.mxu0 0
    %338 = vmatprep.subr.bf16.mxu0 0
    %339 = vmatpush1.bf16.msra.mxu0 0
    %340 = vmatprep.subr.bf16.mxu0 0
    %341 = vmatpush1.bf16.msra.mxu0 0
    %342 = vmatprep.subr.bf16.mxu0 0
    %343 = vmatpush1.bf16.msra.mxu0 0
    %344 = vmatprep.subr.bf16.mxu0 0
    %345 = vmatpush1.bf16.msra.mxu0 0
    %346 = vmatprep.subr.bf16.mxu0 0
    %347 = vmatpush1.bf16.msra.mxu0 0
    %348 = vmatprep.subr.bf16.mxu0 0
    %349 = vmatpush1.bf16.msra.mxu0 %v333
    %350 = vmatprep.subr.bf16.mxu0 0
    %351 = vmatpush1.bf16.msra.mxu0 %v332
    %352 = vmatprep.subr.bf16.mxu0 0
    %353 = vmatpush2.bf16.msra.mxu0 0
    %354 = vmatprep.subr.bf16.mxu0 0
    %355 = vmatpush2.bf16.msra.mxu0 0
    %356 = vmatprep.subr.bf16.mxu0 0
    %357 = vmatpush2.bf16.msra.mxu0 0
    %358 = vmatprep.subr.bf16.mxu0 0
    %359 = vmatpush2.bf16.msra.mxu0 0
    %360 = vmatprep.subr.bf16.mxu0 0
    %361 = vmatpush2.bf16.msra.mxu0 0
    %362 = vmatprep.subr.bf16.mxu0 0
    %363 = vmatpush2.bf16.msra.mxu0 0
    %364 = vmatprep.subr.bf16.mxu0 0
    %365 = vmatpush2.bf16.msra.mxu0 0
    %366 = vmatprep.subr.bf16.mxu0 0
    %367 = vmatpush2.bf16.msra.mxu0 0
    %368 = vmatprep.mubr.bf16.mxu0 0
    %369 = vmatmul.mubr.bf16.gmra.mxu0 %v251
    %v370 = vpop.f32.mrf.mxu0
    %v371 = vadd.f32 %v322, %v370
    %v372 = vpop.f32.mrf.mxu0
    %v373 = vpop.f32.mrf.mxu0
    %v374 = vpop.f32.mrf.mxu0
    %375 = vdwg.mxu0
    %v380 = vunpack.c.l.b16 %v43
    %v381 = vunpack.c.l.b16 %v44
    %v382 = vunpack.c.l.b16 %v45
    %v383 = vunpack.c.l.b16 %v46
    %v384 = vpack.c.b16 %v381, %v380
    %v385 = vpack.c.b16 %v383, %v382
    %388 = vmatprep.subr.bf16.mxu0 0
    %389 = vmatpush1.bf16.msra.mxu0 0
    %390 = vmatprep.subr.bf16.mxu0 0
    %391 = vmatpush1.bf16.msra.mxu0 0
    %392 = vmatprep.subr.bf16.mxu0 0
    %393 = vmatpush1.bf16.msra.mxu0 0
    %394 = vmatprep.subr.bf16.mxu0 0
    %395 = vmatpush1.bf16.msra.mxu0 0
    %396 = vmatprep.subr.bf16.mxu0 0
    %397 = vmatpush1.bf16.msra.mxu0 0
    %398 = vmatprep.subr.bf16.mxu0 0
    %399 = vmatpush1.bf16.msra.mxu0 0
    %400 = vmatprep.subr.bf16.mxu0 0
    %401 = vmatpush1.bf16.msra.mxu0 %v385
    %402 = vmatprep.subr.bf16.mxu0 0
    %403 = vmatpush1.bf16.msra.mxu0 %v384
    %404 = vmatprep.subr.bf16.mxu0 0
    %405 = vmatpush2.bf16.msra.mxu0 0
    %406 = vmatprep.subr.bf16.mxu0 0
    %407 = vmatpush2.bf16.msra.mxu0 0
    %408 = vmatprep.subr.bf16.mxu0 0
    %409 = vmatpush2.bf16.msra.mxu0 0
    %410 = vmatprep.subr.bf16.mxu0 0
    %411 = vmatpush2.bf16.msra.mxu0 0
    %412 = vmatprep.subr.bf16.mxu0 0
    %413 = vmatpush2.bf16.msra.mxu0 0
    %414 = vmatprep.subr.bf16.mxu0 0
    %415 = vmatpush2.bf16.msra.mxu0 0
    %416 = vmatprep.subr.bf16.mxu0 0
    %417 = vmatpush2.bf16.msra.mxu0 0
    %418 = vmatprep.subr.bf16.mxu0 0
    %419 = vmatpush2.bf16.msra.mxu0 0
    %420 = vmatprep.mubr.bf16.mxu0 0
    %421 = vmatmul.mubr.bf16.gmra.mxu0 %v179
    %v422 = vpop.f32.mrf.mxu0
    %v423 = vadd.f32 0.0, %v422
    %v424 = vpop.f32.mrf.mxu0
    %v425 = vpop.f32.mrf.mxu0
    %v426 = vpop.f32.mrf.mxu0
    %427 = vdwg.mxu0
    %v428 = vadd.f32 %v371, %v423
    %v429 = vxor.u32 %v428, 2147483648
    %v430 = vmul.f32 %v429, 1.442695
    %v431 = vpow.pop %v430
    %v432 = vadd.f32 %v431, 1.0
    %v433 = vrcp.pop %v432
    %v434 = vmul.f32 1.0, %v433
    %v435 = vtanh.pop %v428
    %v436 = vmul.f32 %v434, 0.0
    %438 = vrot.lane.b32.xlu0 %v435, 64
    %v439 = vpop.permute.xlu0 %438
    %v441 = vmul.f32 %v434, %v439
    %443 = vrot.lane.b32.xlu0 %v441, 32
    %v444 = vpop.permute.xlu0 %443
    %v446 = vadd.f32 %v436, %v444
    %v447 = vtanh.pop %v446
    %449 = vrot.lane.b32.xlu0 %v447, 64
    %v450 = vpop.permute.xlu0 %449
    %v452 = vmul.f32 %v434, %v450
    %v453 = vpack.c.bf16 %v317, %v317
    %455 = vrot.lane.b32.xlu0 %v453, 32
    %v456 = vpop.permute.xlu0 %455
    %v458 = vsel %vm177, %v456, 0
    %460 = vmatprep.subr.bf16.mxu0 0
    %461 = vmatpush1.bf16.msra.mxu0 0
    %462 = vmatprep.subr.bf16.mxu0 0
    %463 = vmatpush1.bf16.msra.mxu0 0
    %464 = vmatprep.subr.bf16.mxu0 0
    %465 = vmatpush1.bf16.msra.mxu0 0
    %466 = vmatprep.subr.bf16.mxu0 0
    %467 = vmatpush1.bf16.msra.mxu0 0
    %468 = vmatprep.subr.bf16.mxu0 0
    %469 = vmatpush1.bf16.msra.mxu0 0
    %470 = vmatprep.subr.bf16.mxu0 0
    %471 = vmatpush1.bf16.msra.mxu0 0
    %472 = vmatprep.subr.bf16.mxu0 0
    %473 = vmatpush1.bf16.msra.mxu0 %v174
    %474 = vmatprep.subr.bf16.mxu0 0
    %475 = vmatpush1.bf16.msra.mxu0 %v173
    %476 = vmatprep.subr.bf16.mxu0 0
    %477 = vmatpush2.bf16.msra.mxu0 0
    %478 = vmatprep.subr.bf16.mxu0 0
    %479 = vmatpush2.bf16.msra.mxu0 0
    %480 = vmatprep.subr.bf16.mxu0 0
    %481 = vmatpush2.bf16.msra.mxu0 0
    %482 = vmatprep.subr.bf16.mxu0 0
    %483 = vmatpush2.bf16.msra.mxu0 0
    %484 = vmatprep.subr.bf16.mxu0 0
    %485 = vmatpush2.bf16.msra.mxu0 0
    %486 = vmatprep.subr.bf16.mxu0 0
    %487 = vmatpush2.bf16.msra.mxu0 0
    %488 = vmatprep.subr.bf16.mxu0 0
    %489 = vmatpush2.bf16.msra.mxu0 0
    %490 = vmatprep.subr.bf16.mxu0 0
    %491 = vmatpush2.bf16.msra.mxu0 0
    %492 = vmatprep.mubr.bf16.mxu0 0
    %493 = vmatmul.mubr.bf16.gmra.mxu0 %v458
    %v494 = vpop.f32.mrf.mxu0
    %v495 = vadd.f32 0.0, %v494
    %v496 = vpop.f32.mrf.mxu0
    %v497 = vpop.f32.mrf.mxu0
    %v498 = vpop.f32.mrf.mxu0
    %499 = vdwg.mxu0
    %v500 = vadd.f32 %v143, %v495
    %v501 = vxor.u32 %v500, 2147483648
    %v502 = vmul.f32 %v501, 1.442695
    %v503 = vpow.pop %v502
    %v504 = vadd.f32 %v503, 1.0
    %v505 = vrcp.pop %v504
    %v506 = vmul.f32 1.0, %v505
    %v507 = vtanh.pop %v500
    %v508 = vmul.f32 %v506, %v311
    %510 = vrot.lane.b32.xlu0 %v507, 64
    %v511 = vpop.permute.xlu0 %510
    %v513 = vmul.f32 %v506, %v511
    %515 = vrot.lane.b32.xlu0 %v513, 32
    %v516 = vpop.permute.xlu0 %515
    %v518 = vadd.f32 %v508, %v516
    %v519 = vtanh.pop %v518
    %521 = vrot.lane.b32.xlu0 %v519, 64
    %v522 = vpop.permute.xlu0 %521
    %v524 = vmul.f32 %v506, %v522
    %525 = vmatprep.subr.bf16.mxu0 0
    %526 = vmatpush1.bf16.msra.mxu0 0
    %527 = vmatprep.subr.bf16.mxu0 0
    %528 = vmatpush1.bf16.msra.mxu0 0
    %529 = vmatprep.subr.bf16.mxu0 0
    %530 = vmatpush1.bf16.msra.mxu0 0
    %531 = vmatprep.subr.bf16.mxu0 0
    %532 = vmatpush1.bf16.msra.mxu0 0
    %533 = vmatprep.subr.bf16.mxu0 0
    %534 = vmatpush1.bf16.msra.mxu0 0
    %535 = vmatprep.subr.bf16.mxu0 0
    %536 = vmatpush1.bf16.msra.mxu0 0
    %537 = vmatprep.subr.bf16.mxu0 0
    %538 = vmatpush1.bf16.msra.mxu0 %v333
    %539 = vmatprep.subr.bf16.mxu0 0
    %540 = vmatpush1.bf16.msra.mxu0 %v332
    %541 = vmatprep.subr.bf16.mxu0 0
    %542 = vmatpush2.bf16.msra.mxu0 0
    %543 = vmatprep.subr.bf16.mxu0 0
    %544 = vmatpush2.bf16.msra.mxu0 0
    %545 = vmatprep.subr.bf16.mxu0 0
    %546 = vmatpush2.bf16.msra.mxu0 0
    %547 = vmatprep.subr.bf16.mxu0 0
    %548 = vmatpush2.bf16.msra.mxu0 0
    %549 = vmatprep.subr.bf16.mxu0 0
    %550 = vmatpush2.bf16.msra.mxu0 0
    %551 = vmatprep.subr.bf16.mxu0 0
    %552 = vmatpush2.bf16.msra.mxu0 0
    %553 = vmatprep.subr.bf16.mxu0 0
    %554 = vmatpush2.bf16.msra.mxu0 0
    %555 = vmatprep.subr.bf16.mxu0 0
    %556 = vmatpush2.bf16.msra.mxu0 0
    %557 = vmatprep.mubr.bf16.mxu0 0
    %558 = vmatmul.mubr.bf16.gmra.mxu0 %v458
    %v559 = vpop.f32.mrf.mxu0
    %v560 = vadd.f32 %v322, %v559
    %v561 = vpop.f32.mrf.mxu0
    %v562 = vpop.f32.mrf.mxu0
    %v563 = vpop.f32.mrf.mxu0
    %564 = vdwg.mxu0
    %v565 = vpack.c.bf16 %v452, %v452
    %567 = vrot.lane.b32.xlu0 %v565, 32
    %v568 = vpop.permute.xlu0 %567
    %v570 = vsel %vm177, %v568, 0
    %572 = vmatprep.subr.bf16.mxu0 0
    %573 = vmatpush1.bf16.msra.mxu0 0
    %574 = vmatprep.subr.bf16.mxu0 0
    %575 = vmatpush1.bf16.msra.mxu0 0
    %576 = vmatprep.subr.bf16.mxu0 0
    %577 = vmatpush1.bf16.msra.mxu0 0
    %578 = vmatprep.subr.bf16.mxu0 0
    %579 = vmatpush1.bf16.msra.mxu0 0
    %580 = vmatprep.subr.bf16.mxu0 0
    %581 = vmatpush1.bf16.msra.mxu0 0
    %582 = vmatprep.subr.bf16.mxu0 0
    %583 = vmatpush1.bf16.msra.mxu0 0
    %584 = vmatprep.subr.bf16.mxu0 0
    %585 = vmatpush1.bf16.msra.mxu0 %v385
    %586 = vmatprep.subr.bf16.mxu0 0
    %587 = vmatpush1.bf16.msra.mxu0 %v384
    %588 = vmatprep.subr.bf16.mxu0 0
    %589 = vmatpush2.bf16.msra.mxu0 0
    %590 = vmatprep.subr.bf16.mxu0 0
    %591 = vmatpush2.bf16.msra.mxu0 0
    %592 = vmatprep.subr.bf16.mxu0 0
    %593 = vmatpush2.bf16.msra.mxu0 0
    %594 = vmatprep.subr.bf16.mxu0 0
    %595 = vmatpush2.bf16.msra.mxu0 0
    %596 = vmatprep.subr.bf16.mxu0 0
    %597 = vmatpush2.bf16.msra.mxu0 0
    %598 = vmatprep.subr.bf16.mxu0 0
    %599 = vmatpush2.bf16.msra.mxu0 0
    %600 = vmatprep.subr.bf16.mxu0 0
    %601 = vmatpush2.bf16.msra.mxu0 0
    %602 = vmatprep.subr.bf16.mxu0 0
    %603 = vmatpush2.bf16.msra.mxu0 0
    %604 = vmatprep.mubr.bf16.mxu0 0
    %605 = vmatmul.mubr.bf16.gmra.mxu0 %v570
    %v606 = vpop.f32.mrf.mxu0
    %v607 = vadd.f32 0.0, %v606
    %v608 = vpop.f32.mrf.mxu0
    %v609 = vpop.f32.mrf.mxu0
    %v610 = vpop.f32.mrf.mxu0
    %611 = vdwg.mxu0
    %v612 = vadd.f32 %v560, %v607
    %v613 = vxor.u32 %v612, 2147483648
    %v614 = vmul.f32 %v613, 1.442695
    %v615 = vpow.pop %v614
    %v616 = vadd.f32 %v615, 1.0
    %v617 = vrcp.pop %v616
    %v618 = vmul.f32 1.0, %v617
    %v619 = vtanh.pop %v612
    %v620 = vmul.f32 %v618, %v446
    %622 = vrot.lane.b32.xlu0 %v619, 64
    %v623 = vpop.permute.xlu0 %622
    %v625 = vmul.f32 %v618, %v623
    %627 = vrot.lane.b32.xlu0 %v625, 32
    %v628 = vpop.permute.xlu0 %627
    %v630 = vadd.f32 %v620, %v628
    %v631 = vtanh.pop %v630
    %633 = vrot.lane.b32.xlu0 %v631, 64
    %v634 = vpop.permute.xlu0 %633
    %v636 = vmul.f32 %v618, %v634
    %v637 = vpack.c.bf16 %v524, %v524
    %639 = vrot.lane.b32.xlu0 %v637, 32
    %v640 = vpop.permute.xlu0 %639
    %v642 = vsel %vm177, %v640, 0
    %644 = vmatprep.subr.bf16.mxu0 0
    %645 = vmatpush1.bf16.msra.mxu0 0
    %646 = vmatprep.subr.bf16.mxu0 0
    %647 = vmatpush1.bf16.msra.mxu0 0
    %648 = vmatprep.subr.bf16.mxu0 0
    %649 = vmatpush1.bf16.msra.mxu0 0
    %650 = vmatprep.subr.bf16.mxu0 0
    %651 = vmatpush1.bf16.msra.mxu0 0
    %652 = vmatprep.subr.bf16.mxu0 0
    %653 = vmatpush1.bf16.msra.mxu0 0
    %654 = vmatprep.subr.bf16.mxu0 0
    %655 = vmatpush1.bf16.msra.mxu0 0
    %656 = vmatprep.subr.bf16.mxu0 0
    %657 = vmatpush1.bf16.msra.mxu0 %v174
    %658 = vmatprep.subr.bf16.mxu0 0
    %659 = vmatpush1.bf16.msra.mxu0 %v173
    %660 = vmatprep.subr.bf16.mxu0 0
    %661 = vmatpush2.bf16.msra.mxu0 0
    %662 = vmatprep.subr.bf16.mxu0 0
    %663 = vmatpush2.bf16.msra.mxu0 0
    %664 = vmatprep.subr.bf16.mxu0 0
    %665 = vmatpush2.bf16.msra.mxu0 0
    %666 = vmatprep.subr.bf16.mxu0 0
    %667 = vmatpush2.bf16.msra.mxu0 0
    %668 = vmatprep.subr.bf16.mxu0 0
    %669 = vmatpush2.bf16.msra.mxu0 0
    %670 = vmatprep.subr.bf16.mxu0 0
    %671 = vmatpush2.bf16.msra.mxu0 0
    %672 = vmatprep.subr.bf16.mxu0 0
    %673 = vmatpush2.bf16.msra.mxu0 0
    %674 = vmatprep.subr.bf16.mxu0 0
    %675 = vmatpush2.bf16.msra.mxu0 0
    %676 = vmatprep.mubr.bf16.mxu0 0
    %677 = vmatmul.mubr.bf16.gmra.mxu0 %v642
    %v678 = vpop.f32.mrf.mxu0
    %v679 = vadd.f32 0.0, %v678
    %v680 = vpop.f32.mrf.mxu0
    %v681 = vpop.f32.mrf.mxu0
    %v682 = vpop.f32.mrf.mxu0
    %683 = vdwg.mxu0
    %v684 = vadd.f32 %v146, %v679
    %v685 = vxor.u32 %v684, 2147483648
    %v686 = vmul.f32 %v685, 1.442695
    %v687 = vpow.pop %v686
    %v688 = vadd.f32 %v687, 1.0
    %v689 = vrcp.pop %v688
    %v690 = vmul.f32 1.0, %v689
    %v691 = vtanh.pop %v684
    %v692 = vmul.f32 %v690, %v518
    %694 = vrot.lane.b32.xlu0 %v691, 64
    %v695 = vpop.permute.xlu0 %694
    %v697 = vmul.f32 %v690, %v695
    %699 = vrot.lane.b32.xlu0 %v697, 32
    %v700 = vpop.permute.xlu0 %699
    %v702 = vadd.f32 %v692, %v700
    %v703 = vtanh.pop %v702
    %705 = vrot.lane.b32.xlu0 %v703, 64
    %v706 = vpop.permute.xlu0 %705
    %v708 = vmul.f32 %v690, %v706
    %709 = vmatprep.subr.bf16.mxu0 0
    %710 = vmatpush1.bf16.msra.mxu0 0
    %711 = vmatprep.subr.bf16.mxu0 0
    %712 = vmatpush1.bf16.msra.mxu0 0
    %713 = vmatprep.subr.bf16.mxu0 0
    %714 = vmatpush1.bf16.msra.mxu0 0
    %715 = vmatprep.subr.bf16.mxu0 0
    %716 = vmatpush1.bf16.msra.mxu0 0
    %717 = vmatprep.subr.bf16.mxu0 0
    %718 = vmatpush1.bf16.msra.mxu0 0
    %719 = vmatprep.subr.bf16.mxu0 0
    %720 = vmatpush1.bf16.msra.mxu0 0
    %721 = vmatprep.subr.bf16.mxu0 0
    %722 = vmatpush1.bf16.msra.mxu0 %v333
    %723 = vmatprep.subr.bf16.mxu0 0
    %724 = vmatpush1.bf16.msra.mxu0 %v332
    %725 = vmatprep.subr.bf16.mxu0 0
    %726 = vmatpush2.bf16.msra.mxu0 0
    %727 = vmatprep.subr.bf16.mxu0 0
    %728 = vmatpush2.bf16.msra.mxu0 0
    %729 = vmatprep.subr.bf16.mxu0 0
    %730 = vmatpush2.bf16.msra.mxu0 0
    %731 = vmatprep.subr.bf16.mxu0 0
    %732 = vmatpush2.bf16.msra.mxu0 0
    %733 = vmatprep.subr.bf16.mxu0 0
    %734 = vmatpush2.bf16.msra.mxu0 0
    %735 = vmatprep.subr.bf16.mxu0 0
    %736 = vmatpush2.bf16.msra.mxu0 0
    %737 = vmatprep.subr.bf16.mxu0 0
    %738 = vmatpush2.bf16.msra.mxu0 0
    %739 = vmatprep.subr.bf16.mxu0 0
    %740 = vmatpush2.bf16.msra.mxu0 0
    %741 = vmatprep.mubr.bf16.mxu0 0
    %742 = vmatmul.mubr.bf16.gmra.mxu0 %v642
    %v743 = vpop.f32.mrf.mxu0
    %v744 = vadd.f32 %v322, %v743
    %v745 = vpop.f32.mrf.mxu0
    %v746 = vpop.f32.mrf.mxu0
    %v747 = vpop.f32.mrf.mxu0
    %748 = vdwg.mxu0
    %v749 = vpack.c.bf16 %v636, %v636
    %751 = vrot.lane.b32.xlu0 %v749, 32
    %v752 = vpop.permute.xlu0 %751
    %v754 = vsel %vm177, %v752, 0
    %756 = vmatprep.subr.bf16.mxu0 0
    %757 = vmatpush1.bf16.msra.mxu0 0
    %758 = vmatprep.subr.bf16.mxu0 0
    %759 = vmatpush1.bf16.msra.mxu0 0
    %760 = vmatprep.subr.bf16.mxu0 0
    %761 = vmatpush1.bf16.msra.mxu0 0
    %762 = vmatprep.subr.bf16.mxu0 0
    %763 = vmatpush1.bf16.msra.mxu0 0
    %764 = vmatprep.subr.bf16.mxu0 0
    %765 = vmatpush1.bf16.msra.mxu0 0
    %766 = vmatprep.subr.bf16.mxu0 0
    %767 = vmatpush1.bf16.msra.mxu0 0
    %768 = vmatprep.subr.bf16.mxu0 0
    %769 = vmatpush1.bf16.msra.mxu0 %v385
    %770 = vmatprep.subr.bf16.mxu0 0
    %771 = vmatpush1.bf16.msra.mxu0 %v384
    %772 = vmatprep.subr.bf16.mxu0 0
    %773 = vmatpush2.bf16.msra.mxu0 0
    %774 = vmatprep.subr.bf16.mxu0 0
    %775 = vmatpush2.bf16.msra.mxu0 0
    %776 = vmatprep.subr.bf16.mxu0 0
    %777 = vmatpush2.bf16.msra.mxu0 0
    %778 = vmatprep.subr.bf16.mxu0 0
    %779 = vmatpush2.bf16.msra.mxu0 0
    %780 = vmatprep.subr.bf16.mxu0 0
    %781 = vmatpush2.bf16.msra.mxu0 0
    %782 = vmatprep.subr.bf16.mxu0 0
    %783 = vmatpush2.bf16.msra.mxu0 0
    %784 = vmatprep.subr.bf16.mxu0 0
    %785 = vmatpush2.bf16.msra.mxu0 0
    %786 = vmatprep.subr.bf16.mxu0 0
    %787 = vmatpush2.bf16.msra.mxu0 0
    %788 = vmatprep.mubr.bf16.mxu0 0
    %789 = vmatmul.mubr.bf16.gmra.mxu0 %v754
    %v790 = vpop.f32.mrf.mxu0
    %v791 = vadd.f32 0.0, %v790
    %v792 = vpop.f32.mrf.mxu0
    %v793 = vpop.f32.mrf.mxu0
    %v794 = vpop.f32.mrf.mxu0
    %795 = vdwg.mxu0
    %v796 = vadd.f32 %v744, %v791
    %v797 = vxor.u32 %v796, 2147483648
    %v798 = vmul.f32 %v797, 1.442695
    %v799 = vpow.pop %v798
    %v800 = vadd.f32 %v799, 1.0
    %v801 = vrcp.pop %v800
    %v802 = vmul.f32 1.0, %v801
    %v803 = vtanh.pop %v796
    %v804 = vmul.f32 %v802, %v630
    %806 = vrot.lane.b32.xlu0 %v803, 64
    %v807 = vpop.permute.xlu0 %806
    %v809 = vmul.f32 %v802, %v807
    %811 = vrot.lane.b32.xlu0 %v809, 32
    %v812 = vpop.permute.xlu0 %811
    %v814 = vadd.f32 %v804, %v812
    %v815 = vtanh.pop %v814
    %817 = vrot.lane.b32.xlu0 %v815, 64
    %v818 = vpop.permute.xlu0 %817
    %v820 = vmul.f32 %v802, %v818
    %v821 = vpack.c.bf16 %v708, %v708
    %823 = vrot.lane.b32.xlu0 %v821, 32
    %v824 = vpop.permute.xlu0 %823
    %v826 = vsel %vm177, %v824, 0
    %828 = vmatprep.subr.bf16.mxu0 0
    %829 = vmatpush1.bf16.msra.mxu0 0
    %830 = vmatprep.subr.bf16.mxu0 0
    %831 = vmatpush1.bf16.msra.mxu0 0
    %832 = vmatprep.subr.bf16.mxu0 0
    %833 = vmatpush1.bf16.msra.mxu0 0
    %834 = vmatprep.subr.bf16.mxu0 0
    %835 = vmatpush1.bf16.msra.mxu0 0
    %836 = vmatprep.subr.bf16.mxu0 0
    %837 = vmatpush1.bf16.msra.mxu0 0
    %838 = vmatprep.subr.bf16.mxu0 0
    %839 = vmatpush1.bf16.msra.mxu0 0
    %840 = vmatprep.subr.bf16.mxu0 0
    %841 = vmatpush1.bf16.msra.mxu0 %v174
    %842 = vmatprep.subr.bf16.mxu0 0
    %843 = vmatpush1.bf16.msra.mxu0 %v173
    %844 = vmatprep.subr.bf16.mxu0 0
    %845 = vmatpush2.bf16.msra.mxu0 0
    %846 = vmatprep.subr.bf16.mxu0 0
    %847 = vmatpush2.bf16.msra.mxu0 0
    %848 = vmatprep.subr.bf16.mxu0 0
    %849 = vmatpush2.bf16.msra.mxu0 0
    %850 = vmatprep.subr.bf16.mxu0 0
    %851 = vmatpush2.bf16.msra.mxu0 0
    %852 = vmatprep.subr.bf16.mxu0 0
    %853 = vmatpush2.bf16.msra.mxu0 0
    %854 = vmatprep.subr.bf16.mxu0 0
    %855 = vmatpush2.bf16.msra.mxu0 0
    %856 = vmatprep.subr.bf16.mxu0 0
    %857 = vmatpush2.bf16.msra.mxu0 0
    %858 = vmatprep.subr.bf16.mxu0 0
    %859 = vmatpush2.bf16.msra.mxu0 0
    %860 = vmatprep.mubr.bf16.mxu0 0
    %861 = vmatmul.mubr.bf16.gmra.mxu0 %v826
    %v862 = vpop.f32.mrf.mxu0
    %v863 = vadd.f32 0.0, %v862
    %v864 = vpop.f32.mrf.mxu0
    %v865 = vpop.f32.mrf.mxu0
    %v866 = vpop.f32.mrf.mxu0
    %867 = vdwg.mxu0
    %v868 = vadd.f32 %v151, %v863
    %v869 = vxor.u32 %v868, 2147483648
    %v870 = vmul.f32 %v869, 1.442695
    %v871 = vpow.pop %v870
    %v872 = vadd.f32 %v871, 1.0
    %v873 = vrcp.pop %v872
    %v874 = vmul.f32 1.0, %v873
    %v875 = vtanh.pop %v868
    %v876 = vmul.f32 %v874, %v702
    %878 = vrot.lane.b32.xlu0 %v875, 64
    %v879 = vpop.permute.xlu0 %878
    %v881 = vmul.f32 %v874, %v879
    %883 = vrot.lane.b32.xlu0 %v881, 32
    %v884 = vpop.permute.xlu0 %883
    %v886 = vadd.f32 %v876, %v884
    %v887 = vtanh.pop %v886
    %889 = vrot.lane.b32.xlu0 %v887, 64
    %v890 = vpop.permute.xlu0 %889
    %v892 = vmul.f32 %v874, %v890
    %893 = vmatprep.subr.bf16.mxu0 0
    %894 = vmatpush1.bf16.msra.mxu0 0
    %895 = vmatprep.subr.bf16.mxu0 0
    %896 = vmatpush1.bf16.msra.mxu0 0
    %897 = vmatprep.subr.bf16.mxu0 0
    %898 = vmatpush1.bf16.msra.mxu0 0
    %899 = vmatprep.subr.bf16.mxu0 0
    %900 = vmatpush1.bf16.msra.mxu0 0
    %901 = vmatprep.subr.bf16.mxu0 0
    %902 = vmatpush1.bf16.msra.mxu0 0
    %903 = vmatprep.subr.bf16.mxu0 0
    %904 = vmatpush1.bf16.msra.mxu0 0
    %905 = vmatprep.subr.bf16.mxu0 0
    %906 = vmatpush1.bf16.msra.mxu0 %v333
    %907 = vmatprep.subr.bf16.mxu0 0
    %908 = vmatpush1.bf16.msra.mxu0 %v332
    %909 = vmatprep.subr.bf16.mxu0 0
    %910 = vmatpush2.bf16.msra.mxu0 0
    %911 = vmatprep.subr.bf16.mxu0 0
    %912 = vmatpush2.bf16.msra.mxu0 0
    %913 = vmatprep.subr.bf16.mxu0 0
    %914 = vmatpush2.bf16.msra.mxu0 0
    %915 = vmatprep.subr.bf16.mxu0 0
    %916 = vmatpush2.bf16.msra.mxu0 0
    %917 = vmatprep.subr.bf16.mxu0 0
    %918 = vmatpush2.bf16.msra.mxu0 0
    %919 = vmatprep.subr.bf16.mxu0 0
    %920 = vmatpush2.bf16.msra.mxu0 0
    %921 = vmatprep.subr.bf16.mxu0 0
    %922 = vmatpush2.bf16.msra.mxu0 0
    %923 = vmatprep.subr.bf16.mxu0 0
    %924 = vmatpush2.bf16.msra.mxu0 0
    %925 = vmatprep.mubr.bf16.mxu0 0
    %926 = vmatmul.mubr.bf16.gmra.mxu0 %v826
    %v927 = vpop.f32.mrf.mxu0
    %v928 = vadd.f32 %v322, %v927
    %v929 = vpop.f32.mrf.mxu0
    %v930 = vpop.f32.mrf.mxu0
    %v931 = vpop.f32.mrf.mxu0
    %932 = vdwg.mxu0
    %v933 = vpack.c.bf16 %v820, %v820
    %935 = vrot.lane.b32.xlu0 %v933, 32
    %v936 = vpop.permute.xlu0 %935
    %v938 = vsel %vm177, %v936, 0
    %940 = vmatprep.subr.bf16.mxu0 0
    %941 = vmatpush1.bf16.msra.mxu0 0
    %942 = vmatprep.subr.bf16.mxu0 0
    %943 = vmatpush1.bf16.msra.mxu0 0
    %944 = vmatprep.subr.bf16.mxu0 0
    %945 = vmatpush1.bf16.msra.mxu0 0
    %946 = vmatprep.subr.bf16.mxu0 0
    %947 = vmatpush1.bf16.msra.mxu0 0
    %948 = vmatprep.subr.bf16.mxu0 0
    %949 = vmatpush1.bf16.msra.mxu0 0
    %950 = vmatprep.subr.bf16.mxu0 0
    %951 = vmatpush1.bf16.msra.mxu0 0
    %952 = vmatprep.subr.bf16.mxu0 0
    %953 = vmatpush1.bf16.msra.mxu0 %v385
    %954 = vmatprep.subr.bf16.mxu0 0
    %955 = vmatpush1.bf16.msra.mxu0 %v384
    %956 = vmatprep.subr.bf16.mxu0 0
    %957 = vmatpush2.bf16.msra.mxu0 0
    %958 = vmatprep.subr.bf16.mxu0 0
    %959 = vmatpush2.bf16.msra.mxu0 0
    %960 = vmatprep.subr.bf16.mxu0 0
    %961 = vmatpush2.bf16.msra.mxu0 0
    %962 = vmatprep.subr.bf16.mxu0 0
    %963 = vmatpush2.bf16.msra.mxu0 0
    %964 = vmatprep.subr.bf16.mxu0 0
    %965 = vmatpush2.bf16.msra.mxu0 0
    %966 = vmatprep.subr.bf16.mxu0 0
    %967 = vmatpush2.bf16.msra.mxu0 0
    %968 = vmatprep.subr.bf16.mxu0 0
    %969 = vmatpush2.bf16.msra.mxu0 0
    %970 = vmatprep.subr.bf16.mxu0 0
    %971 = vmatpush2.bf16.msra.mxu0 0
    %972 = vmatprep.mubr.bf16.mxu0 0
    %973 = vmatmul.mubr.bf16.gmra.mxu0 %v938
    %v974 = vpop.f32.mrf.mxu0
    %v975 = vadd.f32 0.0, %v974
    %v976 = vpop.f32.mrf.mxu0
    %v977 = vpop.f32.mrf.mxu0
    %v978 = vpop.f32.mrf.mxu0
    %979 = vdwg.mxu0
    %v980 = vadd.f32 %v928, %v975
    %v981 = vxor.u32 %v980, 2147483648
    %v982 = vmul.f32 %v981, 1.442695
    %v983 = vpow.pop %v982
    %v984 = vadd.f32 %v983, 1.0
    %v985 = vrcp.pop %v984
    %v986 = vmul.f32 1.0, %v985
    %v987 = vtanh.pop %v980
    %v988 = vmul.f32 %v986, %v814
    %990 = vrot.lane.b32.xlu0 %v987, 64
    %v991 = vpop.permute.xlu0 %990
    %v993 = vmul.f32 %v986, %v991
    %995 = vrot.lane.b32.xlu0 %v993, 32
    %v996 = vpop.permute.xlu0 %995
    %v998 = vadd.f32 %v988, %v996
    %v999 = vtanh.pop %v998
    %1001 = vrot.lane.b32.xlu0 %v999, 64
    %v1002 = vpop.permute.xlu0 %1001
    %v1004 = vmul.f32 %v986, %v1002
    %v1005 = vpack.c.bf16 %v892, %v892
    %1007 = vrot.lane.b32.xlu0 %v1005, 32
    %v1008 = vpop.permute.xlu0 %1007
    %v1010 = vsel %vm177, %v1008, 0
    %1012 = vmatprep.subr.bf16.mxu0 0
    %1013 = vmatpush1.bf16.msra.mxu0 0
    %1014 = vmatprep.subr.bf16.mxu0 0
    %1015 = vmatpush1.bf16.msra.mxu0 0
    %1016 = vmatprep.subr.bf16.mxu0 0
    %1017 = vmatpush1.bf16.msra.mxu0 0
    %1018 = vmatprep.subr.bf16.mxu0 0
    %1019 = vmatpush1.bf16.msra.mxu0 0
    %1020 = vmatprep.subr.bf16.mxu0 0
    %1021 = vmatpush1.bf16.msra.mxu0 0
    %1022 = vmatprep.subr.bf16.mxu0 0
    %1023 = vmatpush1.bf16.msra.mxu0 0
    %1024 = vmatprep.subr.bf16.mxu0 0
    %1025 = vmatpush1.bf16.msra.mxu0 %v174
    %1026 = vmatprep.subr.bf16.mxu0 0
    %1027 = vmatpush1.bf16.msra.mxu0 %v173
    %1028 = vmatprep.subr.bf16.mxu0 0
    %1029 = vmatpush2.bf16.msra.mxu0 0
    %1030 = vmatprep.subr.bf16.mxu0 0
    %1031 = vmatpush2.bf16.msra.mxu0 0
    %1032 = vmatprep.subr.bf16.mxu0 0
    %1033 = vmatpush2.bf16.msra.mxu0 0
    %1034 = vmatprep.subr.bf16.mxu0 0
    %1035 = vmatpush2.bf16.msra.mxu0 0
    %1036 = vmatprep.subr.bf16.mxu0 0
    %1037 = vmatpush2.bf16.msra.mxu0 0
    %1038 = vmatprep.subr.bf16.mxu0 0
    %1039 = vmatpush2.bf16.msra.mxu0 0
    %1040 = vmatprep.subr.bf16.mxu0 0
    %1041 = vmatpush2.bf16.msra.mxu0 0
    %1042 = vmatprep.subr.bf16.mxu0 0
    %1043 = vmatpush2.bf16.msra.mxu0 0
    %1044 = vmatprep.mubr.bf16.mxu0 0
    %1045 = vmatmul.mubr.bf16.gmra.mxu0 %v1010
    %v1046 = vpop.f32.mrf.mxu0
    %v1047 = vadd.f32 0.0, %v1046
    %v1048 = vpop.f32.mrf.mxu0
    %v1049 = vpop.f32.mrf.mxu0
    %v1050 = vpop.f32.mrf.mxu0
    %1051 = vdwg.mxu0
    %v1052 = vadd.f32 %v154, %v1047
    %v1053 = vxor.u32 %v1052, 2147483648
    %v1054 = vmul.f32 %v1053, 1.442695
    %v1055 = vpow.pop %v1054
    %v1056 = vadd.f32 %v1055, 1.0
    %v1057 = vrcp.pop %v1056
    %v1058 = vmul.f32 1.0, %v1057
    %v1059 = vtanh.pop %v1052
    %v1060 = vmul.f32 %v1058, %v886
    %1062 = vrot.lane.b32.xlu0 %v1059, 64
    %v1063 = vpop.permute.xlu0 %1062
    %v1065 = vmul.f32 %v1058, %v1063
    %1067 = vrot.lane.b32.xlu0 %v1065, 32
    %v1068 = vpop.permute.xlu0 %1067
    %v1070 = vadd.f32 %v1060, %v1068
    %v1071 = vtanh.pop %v1070
    %1073 = vrot.lane.b32.xlu0 %v1071, 64
    %v1074 = vpop.permute.xlu0 %1073
    %v1076 = vmul.f32 %v1058, %v1074
    %1077 = vmatprep.subr.bf16.mxu0 0
    %1078 = vmatpush1.bf16.msra.mxu0 0
    %1079 = vmatprep.subr.bf16.mxu0 0
    %1080 = vmatpush1.bf16.msra.mxu0 0
    %1081 = vmatprep.subr.bf16.mxu0 0
    %1082 = vmatpush1.bf16.msra.mxu0 0
    %1083 = vmatprep.subr.bf16.mxu0 0
    %1084 = vmatpush1.bf16.msra.mxu0 0
    %1085 = vmatprep.subr.bf16.mxu0 0
    %1086 = vmatpush1.bf16.msra.mxu0 0
    %1087 = vmatprep.subr.bf16.mxu0 0
    %1088 = vmatpush1.bf16.msra.mxu0 0
    %1089 = vmatprep.subr.bf16.mxu0 0
    %1090 = vmatpush1.bf16.msra.mxu0 %v333
    %1091 = vmatprep.subr.bf16.mxu0 0
    %1092 = vmatpush1.bf16.msra.mxu0 %v332
    %1093 = vmatprep.subr.bf16.mxu0 0
    %1094 = vmatpush2.bf16.msra.mxu0 0
    %1095 = vmatprep.subr.bf16.mxu0 0
    %1096 = vmatpush2.bf16.msra.mxu0 0
    %1097 = vmatprep.subr.bf16.mxu0 0
    %1098 = vmatpush2.bf16.msra.mxu0 0
    %1099 = vmatprep.subr.bf16.mxu0 0
    %1100 = vmatpush2.bf16.msra.mxu0 0
    %1101 = vmatprep.subr.bf16.mxu0 0
    %1102 = vmatpush2.bf16.msra.mxu0 0
    %1103 = vmatprep.subr.bf16.mxu0 0
    %1104 = vmatpush2.bf16.msra.mxu0 0
    %1105 = vmatprep.subr.bf16.mxu0 0
    %1106 = vmatpush2.bf16.msra.mxu0 0
    %1107 = vmatprep.subr.bf16.mxu0 0
    %1108 = vmatpush2.bf16.msra.mxu0 0
    %1109 = vmatprep.mubr.bf16.mxu0 0
    %1110 = vmatmul.mubr.bf16.gmra.mxu0 %v1010
    %v1111 = vpop.f32.mrf.mxu0
    %v1112 = vadd.f32 %v322, %v1111
    %v1113 = vpop.f32.mrf.mxu0
    %v1114 = vpop.f32.mrf.mxu0
    %v1115 = vpop.f32.mrf.mxu0
    %1116 = vdwg.mxu0
    %v1117 = vpack.c.bf16 %v1004, %v1004
    %1119 = vrot.lane.b32.xlu0 %v1117, 32
    %v1120 = vpop.permute.xlu0 %1119
    %v1122 = vsel %vm177, %v1120, 0
    %1124 = vmatprep.subr.bf16.mxu0 0
    %1125 = vmatpush1.bf16.msra.mxu0 0
    %1126 = vmatprep.subr.bf16.mxu0 0
    %1127 = vmatpush1.bf16.msra.mxu0 0
    %1128 = vmatprep.subr.bf16.mxu0 0
    %1129 = vmatpush1.bf16.msra.mxu0 0
    %1130 = vmatprep.subr.bf16.mxu0 0
    %1131 = vmatpush1.bf16.msra.mxu0 0
    %1132 = vmatprep.subr.bf16.mxu0 0
    %1133 = vmatpush1.bf16.msra.mxu0 0
    %1134 = vmatprep.subr.bf16.mxu0 0
    %1135 = vmatpush1.bf16.msra.mxu0 0
    %1136 = vmatprep.subr.bf16.mxu0 0
    %1137 = vmatpush1.bf16.msra.mxu0 %v385
    %1138 = vmatprep.subr.bf16.mxu0 0
    %1139 = vmatpush1.bf16.msra.mxu0 %v384
    %1140 = vmatprep.subr.bf16.mxu0 0
    %1141 = vmatpush2.bf16.msra.mxu0 0
    %1142 = vmatprep.subr.bf16.mxu0 0
    %1143 = vmatpush2.bf16.msra.mxu0 0
    %1144 = vmatprep.subr.bf16.mxu0 0
    %1145 = vmatpush2.bf16.msra.mxu0 0
    %1146 = vmatprep.subr.bf16.mxu0 0
    %1147 = vmatpush2.bf16.msra.mxu0 0
    %1148 = vmatprep.subr.bf16.mxu0 0
    %1149 = vmatpush2.bf16.msra.mxu0 0
    %1150 = vmatprep.subr.bf16.mxu0 0
    %1151 = vmatpush2.bf16.msra.mxu0 0
    %1152 = vmatprep.subr.bf16.mxu0 0
    %1153 = vmatpush2.bf16.msra.mxu0 0
    %1154 = vmatprep.subr.bf16.mxu0 0
    %1155 = vmatpush2.bf16.msra.mxu0 0
    %1156 = vmatprep.mubr.bf16.mxu0 0
    %1157 = vmatmul.mubr.bf16.gmra.mxu0 %v1122
    %v1158 = vpop.f32.mrf.mxu0
    %v1159 = vadd.f32 0.0, %v1158
    %v1160 = vpop.f32.mrf.mxu0
    %v1161 = vpop.f32.mrf.mxu0
    %v1162 = vpop.f32.mrf.mxu0
    %1163 = vdwg.mxu0
    %v1164 = vadd.f32 %v1112, %v1159
    %v1165 = vxor.u32 %v1164, 2147483648
    %v1166 = vmul.f32 %v1165, 1.442695
    %v1167 = vpow.pop %v1166
    %v1168 = vadd.f32 %v1167, 1.0
    %v1169 = vrcp.pop %v1168
    %v1170 = vmul.f32 1.0, %v1169
    %v1171 = vtanh.pop %v1164
    %v1172 = vmul.f32 %v1170, %v998
    %1174 = vrot.lane.b32.xlu0 %v1171, 64
    %v1175 = vpop.permute.xlu0 %1174
    %v1177 = vmul.f32 %v1170, %v1175
    %1179 = vrot.lane.b32.xlu0 %v1177, 32
    %v1180 = vpop.permute.xlu0 %1179
    %v1182 = vadd.f32 %v1172, %v1180
    %v1183 = vtanh.pop %v1182
    %1185 = vrot.lane.b32.xlu0 %v1183, 64
    %v1186 = vpop.permute.xlu0 %1185
    %v1188 = vmul.f32 %v1170, %v1186
    %v1189 = vpack.c.bf16 %v1076, %v1076
    %1191 = vrot.lane.b32.xlu0 %v1189, 32
    %v1192 = vpop.permute.xlu0 %1191
    %v1194 = vsel %vm177, %v1192, 0
    %1196 = vmatprep.subr.bf16.mxu0 0
    %1197 = vmatpush1.bf16.msra.mxu0 0
    %1198 = vmatprep.subr.bf16.mxu0 0
    %1199 = vmatpush1.bf16.msra.mxu0 0
    %1200 = vmatprep.subr.bf16.mxu0 0
    %1201 = vmatpush1.bf16.msra.mxu0 0
    %1202 = vmatprep.subr.bf16.mxu0 0
    %1203 = vmatpush1.bf16.msra.mxu0 0
    %1204 = vmatprep.subr.bf16.mxu0 0
    %1205 = vmatpush1.bf16.msra.mxu0 0
    %1206 = vmatprep.subr.bf16.mxu0 0
    %1207 = vmatpush1.bf16.msra.mxu0 0
    %1208 = vmatprep.subr.bf16.mxu0 0
    %1209 = vmatpush1.bf16.msra.mxu0 %v174
    %1210 = vmatprep.subr.bf16.mxu0 0
    %1211 = vmatpush1.bf16.msra.mxu0 %v173
    %1212 = vmatprep.subr.bf16.mxu0 0
    %1213 = vmatpush2.bf16.msra.mxu0 0
    %1214 = vmatprep.subr.bf16.mxu0 0
    %1215 = vmatpush2.bf16.msra.mxu0 0
    %1216 = vmatprep.subr.bf16.mxu0 0
    %1217 = vmatpush2.bf16.msra.mxu0 0
    %1218 = vmatprep.subr.bf16.mxu0 0
    %1219 = vmatpush2.bf16.msra.mxu0 0
    %1220 = vmatprep.subr.bf16.mxu0 0
    %1221 = vmatpush2.bf16.msra.mxu0 0
    %1222 = vmatprep.subr.bf16.mxu0 0
    %1223 = vmatpush2.bf16.msra.mxu0 0
    %1224 = vmatprep.subr.bf16.mxu0 0
    %1225 = vmatpush2.bf16.msra.mxu0 0
    %1226 = vmatprep.subr.bf16.mxu0 0
    %1227 = vmatpush2.bf16.msra.mxu0 0
    %1228 = vmatprep.mubr.bf16.mxu0 0
    %1229 = vmatmul.mubr.bf16.gmra.mxu0 %v1194
    %v1230 = vpop.f32.mrf.mxu0
    %v1231 = vadd.f32 0.0, %v1230
    %v1232 = vpop.f32.mrf.mxu0
    %v1233 = vpop.f32.mrf.mxu0
    %v1234 = vpop.f32.mrf.mxu0
    %1235 = vdwg.mxu0
    %v1236 = vadd.f32 %v159, %v1231
    %v1237 = vxor.u32 %v1236, 2147483648
    %v1238 = vmul.f32 %v1237, 1.442695
    %v1239 = vpow.pop %v1238
    %v1240 = vadd.f32 %v1239, 1.0
    %v1241 = vrcp.pop %v1240
    %v1242 = vmul.f32 1.0, %v1241
    %v1243 = vtanh.pop %v1236
    %v1244 = vmul.f32 %v1242, %v1070
    %1246 = vrot.lane.b32.xlu0 %v1243, 64
    %v1247 = vpop.permute.xlu0 %1246
    %v1249 = vmul.f32 %v1242, %v1247
    %1251 = vrot.lane.b32.xlu0 %v1249, 32
    %v1252 = vpop.permute.xlu0 %1251
    %v1254 = vadd.f32 %v1244, %v1252
    %v1255 = vtanh.pop %v1254
    %1257 = vrot.lane.b32.xlu0 %v1255, 64
    %v1258 = vpop.permute.xlu0 %1257
    %v1260 = vmul.f32 %v1242, %v1258
    %1261 = vmatprep.subr.bf16.mxu0 0
    %1262 = vmatpush1.bf16.msra.mxu0 0
    %1263 = vmatprep.subr.bf16.mxu0 0
    %1264 = vmatpush1.bf16.msra.mxu0 0
    %1265 = vmatprep.subr.bf16.mxu0 0
    %1266 = vmatpush1.bf16.msra.mxu0 0
    %1267 = vmatprep.subr.bf16.mxu0 0
    %1268 = vmatpush1.bf16.msra.mxu0 0
    %1269 = vmatprep.subr.bf16.mxu0 0
    %1270 = vmatpush1.bf16.msra.mxu0 0
    %1271 = vmatprep.subr.bf16.mxu0 0
    %1272 = vmatpush1.bf16.msra.mxu0 0
    %1273 = vmatprep.subr.bf16.mxu0 0
    %1274 = vmatpush1.bf16.msra.mxu0 %v333
    %1275 = vmatprep.subr.bf16.mxu0 0
    %1276 = vmatpush1.bf16.msra.mxu0 %v332
    %1277 = vmatprep.subr.bf16.mxu0 0
    %1278 = vmatpush2.bf16.msra.mxu0 0
    %1279 = vmatprep.subr.bf16.mxu0 0
    %1280 = vmatpush2.bf16.msra.mxu0 0
    %1281 = vmatprep.subr.bf16.mxu0 0
    %1282 = vmatpush2.bf16.msra.mxu0 0
    %1283 = vmatprep.subr.bf16.mxu0 0
    %1284 = vmatpush2.bf16.msra.mxu0 0
    %1285 = vmatprep.subr.bf16.mxu0 0
    %1286 = vmatpush2.bf16.msra.mxu0 0
    %1287 = vmatprep.subr.bf16.mxu0 0
    %1288 = vmatpush2.bf16.msra.mxu0 0
    %1289 = vmatprep.subr.bf16.mxu0 0
    %1290 = vmatpush2.bf16.msra.mxu0 0
    %1291 = vmatprep.subr.bf16.mxu0 0
    %1292 = vmatpush2.bf16.msra.mxu0 0
    %1293 = vmatprep.mubr.bf16.mxu0 0
    %1294 = vmatmul.mubr.bf16.gmra.mxu0 %v1194
    %v1295 = vpop.f32.mrf.mxu0
    %v1296 = vadd.f32 %v322, %v1295
    %v1297 = vpop.f32.mrf.mxu0
    %v1298 = vpop.f32.mrf.mxu0
    %v1299 = vpop.f32.mrf.mxu0
    %1300 = vdwg.mxu0
    %v1301 = vpack.c.bf16 %v1188, %v1188
    %1303 = vrot.lane.b32.xlu0 %v1301, 32
    %v1304 = vpop.permute.xlu0 %1303
    %v1306 = vsel %vm177, %v1304, 0
    %1308 = vmatprep.subr.bf16.mxu0 0
    %1309 = vmatpush1.bf16.msra.mxu0 0
    %1310 = vmatprep.subr.bf16.mxu0 0
    %1311 = vmatpush1.bf16.msra.mxu0 0
    %1312 = vmatprep.subr.bf16.mxu0 0
    %1313 = vmatpush1.bf16.msra.mxu0 0
    %1314 = vmatprep.subr.bf16.mxu0 0
    %1315 = vmatpush1.bf16.msra.mxu0 0
    %1316 = vmatprep.subr.bf16.mxu0 0
    %1317 = vmatpush1.bf16.msra.mxu0 0
    %1318 = vmatprep.subr.bf16.mxu0 0
    %1319 = vmatpush1.bf16.msra.mxu0 0
    %1320 = vmatprep.subr.bf16.mxu0 0
    %1321 = vmatpush1.bf16.msra.mxu0 %v385
    %1322 = vmatprep.subr.bf16.mxu0 0
    %1323 = vmatpush1.bf16.msra.mxu0 %v384
    %1324 = vmatprep.subr.bf16.mxu0 0
    %1325 = vmatpush2.bf16.msra.mxu0 0
    %1326 = vmatprep.subr.bf16.mxu0 0
    %1327 = vmatpush2.bf16.msra.mxu0 0
    %1328 = vmatprep.subr.bf16.mxu0 0
    %1329 = vmatpush2.bf16.msra.mxu0 0
    %1330 = vmatprep.subr.bf16.mxu0 0
    %1331 = vmatpush2.bf16.msra.mxu0 0
    %1332 = vmatprep.subr.bf16.mxu0 0
    %1333 = vmatpush2.bf16.msra.mxu0 0
    %1334 = vmatprep.subr.bf16.mxu0 0
    %1335 = vmatpush2.bf16.msra.mxu0 0
    %1336 = vmatprep.subr.bf16.mxu0 0
    %1337 = vmatpush2.bf16.msra.mxu0 0
    %1338 = vmatprep.subr.bf16.mxu0 0
    %1339 = vmatpush2.bf16.msra.mxu0 0
    %1340 = vmatprep.mubr.bf16.mxu0 0
    %1341 = vmatmul.mubr.bf16.gmra.mxu0 %v1306
    %v1342 = vpop.f32.mrf.mxu0
    %v1343 = vadd.f32 0.0, %v1342
    %v1344 = vpop.f32.mrf.mxu0
    %v1345 = vpop.f32.mrf.mxu0
    %v1346 = vpop.f32.mrf.mxu0
    %1347 = vdwg.mxu0
    %v1348 = vadd.f32 %v1296, %v1343
    %v1349 = vxor.u32 %v1348, 2147483648
    %v1350 = vmul.f32 %v1349, 1.442695
    %v1351 = vpow.pop %v1350
    %v1352 = vadd.f32 %v1351, 1.0
    %v1353 = vrcp.pop %v1352
    %v1354 = vmul.f32 1.0, %v1353
    %v1355 = vtanh.pop %v1348
    %v1356 = vmul.f32 %v1354, %v1182
    %1358 = vrot.lane.b32.xlu0 %v1355, 64
    %v1359 = vpop.permute.xlu0 %1358
    %v1361 = vmul.f32 %v1354, %v1359
    %1363 = vrot.lane.b32.xlu0 %v1361, 32
    %v1364 = vpop.permute.xlu0 %1363
    %v1366 = vadd.f32 %v1356, %v1364
    %v1367 = vtanh.pop %v1366
    %1369 = vrot.lane.b32.xlu0 %v1367, 64
    %v1370 = vpop.permute.xlu0 %1369
    %v1372 = vmul.f32 %v1354, %v1370
    %v1373 = vpack.c.bf16 %v1260, %v1260
    %1375 = vrot.lane.b32.xlu0 %v1373, 32
    %v1376 = vpop.permute.xlu0 %1375
    %v1378 = vsel %vm177, %v1376, 0
    %1380 = vmatprep.subr.bf16.mxu0 0
    %1381 = vmatpush1.bf16.msra.mxu0 0
    %1382 = vmatprep.subr.bf16.mxu0 0
    %1383 = vmatpush1.bf16.msra.mxu0 0
    %1384 = vmatprep.subr.bf16.mxu0 0
    %1385 = vmatpush1.bf16.msra.mxu0 0
    %1386 = vmatprep.subr.bf16.mxu0 0
    %1387 = vmatpush1.bf16.msra.mxu0 0
    %1388 = vmatprep.subr.bf16.mxu0 0
    %1389 = vmatpush1.bf16.msra.mxu0 0
    %1390 = vmatprep.subr.bf16.mxu0 0
    %1391 = vmatpush1.bf16.msra.mxu0 0
    %1392 = vmatprep.subr.bf16.mxu0 0
    %1393 = vmatpush1.bf16.msra.mxu0 %v174
    %1394 = vmatprep.subr.bf16.mxu0 0
    %1395 = vmatpush1.bf16.msra.mxu0 %v173
    %1396 = vmatprep.subr.bf16.mxu0 0
    %1397 = vmatpush2.bf16.msra.mxu0 0
    %1398 = vmatprep.subr.bf16.mxu0 0
    %1399 = vmatpush2.bf16.msra.mxu0 0
    %1400 = vmatprep.subr.bf16.mxu0 0
    %1401 = vmatpush2.bf16.msra.mxu0 0
    %1402 = vmatprep.subr.bf16.mxu0 0
    %1403 = vmatpush2.bf16.msra.mxu0 0
    %1404 = vmatprep.subr.bf16.mxu0 0
    %1405 = vmatpush2.bf16.msra.mxu0 0
    %1406 = vmatprep.subr.bf16.mxu0 0
    %1407 = vmatpush2.bf16.msra.mxu0 0
    %1408 = vmatprep.subr.bf16.mxu0 0
    %1409 = vmatpush2.bf16.msra.mxu0 0
    %1410 = vmatprep.subr.bf16.mxu0 0
    %1411 = vmatpush2.bf16.msra.mxu0 0
    %1412 = vmatprep.mubr.bf16.mxu0 0
    %1413 = vmatmul.mubr.bf16.gmra.mxu0 %v1378
    %v1414 = vpop.f32.mrf.mxu0
    %v1415 = vadd.f32 0.0, %v1414
    %v1416 = vpop.f32.mrf.mxu0
    %v1417 = vpop.f32.mrf.mxu0
    %v1418 = vpop.f32.mrf.mxu0
    %1419 = vdwg.mxu0
    %v1420 = vadd.f32 %v162, %v1415
    %v1421 = vxor.u32 %v1420, 2147483648
    %v1422 = vmul.f32 %v1421, 1.442695
    %v1423 = vpow.pop %v1422
    %v1424 = vadd.f32 %v1423, 1.0
    %v1425 = vrcp.pop %v1424
    %v1426 = vmul.f32 1.0, %v1425
    %v1427 = vtanh.pop %v1420
    %v1428 = vmul.f32 %v1426, %v1254
    %1430 = vrot.lane.b32.xlu0 %v1427, 64
    %v1431 = vpop.permute.xlu0 %1430
    %v1433 = vmul.f32 %v1426, %v1431
    %1435 = vrot.lane.b32.xlu0 %v1433, 32
    %v1436 = vpop.permute.xlu0 %1435
    %v1438 = vadd.f32 %v1428, %v1436
    %v1439 = vtanh.pop %v1438
    %1441 = vrot.lane.b32.xlu0 %v1439, 64
    %v1442 = vpop.permute.xlu0 %1441
    %v1444 = vmul.f32 %v1426, %v1442
    %1445 = vmatprep.subr.bf16.mxu0 0
    %1446 = vmatpush1.bf16.msra.mxu0 0
    %1447 = vmatprep.subr.bf16.mxu0 0
    %1448 = vmatpush1.bf16.msra.mxu0 0
    %1449 = vmatprep.subr.bf16.mxu0 0
    %1450 = vmatpush1.bf16.msra.mxu0 0
    %1451 = vmatprep.subr.bf16.mxu0 0
    %1452 = vmatpush1.bf16.msra.mxu0 0
    %1453 = vmatprep.subr.bf16.mxu0 0
    %1454 = vmatpush1.bf16.msra.mxu0 0
    %1455 = vmatprep.subr.bf16.mxu0 0
    %1456 = vmatpush1.bf16.msra.mxu0 0
    %1457 = vmatprep.subr.bf16.mxu0 0
    %1458 = vmatpush1.bf16.msra.mxu0 %v333
    %1459 = vmatprep.subr.bf16.mxu0 0
    %1460 = vmatpush1.bf16.msra.mxu0 %v332
    %1461 = vmatprep.subr.bf16.mxu0 0
    %1462 = vmatpush2.bf16.msra.mxu0 0
    %1463 = vmatprep.subr.bf16.mxu0 0
    %1464 = vmatpush2.bf16.msra.mxu0 0
    %1465 = vmatprep.subr.bf16.mxu0 0
    %1466 = vmatpush2.bf16.msra.mxu0 0
    %1467 = vmatprep.subr.bf16.mxu0 0
    %1468 = vmatpush2.bf16.msra.mxu0 0
    %1469 = vmatprep.subr.bf16.mxu0 0
    %1470 = vmatpush2.bf16.msra.mxu0 0
    %1471 = vmatprep.subr.bf16.mxu0 0
    %1472 = vmatpush2.bf16.msra.mxu0 0
    %1473 = vmatprep.subr.bf16.mxu0 0
    %1474 = vmatpush2.bf16.msra.mxu0 0
    %1475 = vmatprep.subr.bf16.mxu0 0
    %1476 = vmatpush2.bf16.msra.mxu0 0
    %1477 = vmatprep.mubr.bf16.mxu0 0
    %1478 = vmatmul.mubr.bf16.gmra.mxu0 %v1378
    %v1479 = vpop.f32.mrf.mxu0
    %v1480 = vadd.f32 %v322, %v1479
    %v1481 = vpop.f32.mrf.mxu0
    %v1482 = vpop.f32.mrf.mxu0
    %v1483 = vpop.f32.mrf.mxu0
    %1484 = vdwg.mxu0
    %v1485 = vpack.c.bf16 %v1372, %v1372
    %1487 = vrot.lane.b32.xlu0 %v1485, 32
    %v1488 = vpop.permute.xlu0 %1487
    %v1490 = vsel %vm177, %v1488, 0
    %1492 = vmatprep.subr.bf16.mxu0 0
    %1493 = vmatpush1.bf16.msra.mxu0 0
    %1494 = vmatprep.subr.bf16.mxu0 0
    %1495 = vmatpush1.bf16.msra.mxu0 0
    %1496 = vmatprep.subr.bf16.mxu0 0
    %1497 = vmatpush1.bf16.msra.mxu0 0
    %1498 = vmatprep.subr.bf16.mxu0 0
    %1499 = vmatpush1.bf16.msra.mxu0 0
    %1500 = vmatprep.subr.bf16.mxu0 0
    %1501 = vmatpush1.bf16.msra.mxu0 0
    %1502 = vmatprep.subr.bf16.mxu0 0
    %1503 = vmatpush1.bf16.msra.mxu0 0
    %1504 = vmatprep.subr.bf16.mxu0 0
    %1505 = vmatpush1.bf16.msra.mxu0 %v385
    %1506 = vmatprep.subr.bf16.mxu0 0
    %1507 = vmatpush1.bf16.msra.mxu0 %v384
    %1508 = vmatprep.subr.bf16.mxu0 0
    %1509 = vmatpush2.bf16.msra.mxu0 0
    %1510 = vmatprep.subr.bf16.mxu0 0
    %1511 = vmatpush2.bf16.msra.mxu0 0
    %1512 = vmatprep.subr.bf16.mxu0 0
    %1513 = vmatpush2.bf16.msra.mxu0 0
    %1514 = vmatprep.subr.bf16.mxu0 0
    %1515 = vmatpush2.bf16.msra.mxu0 0
    %1516 = vmatprep.subr.bf16.mxu0 0
    %1517 = vmatpush2.bf16.msra.mxu0 0
    %1518 = vmatprep.subr.bf16.mxu0 0
    %1519 = vmatpush2.bf16.msra.mxu0 0
    %1520 = vmatprep.subr.bf16.mxu0 0
    %1521 = vmatpush2.bf16.msra.mxu0 0
    %1522 = vmatprep.subr.bf16.mxu0 0
    %1523 = vmatpush2.bf16.msra.mxu0 0
    %1524 = vmatprep.mubr.bf16.mxu0 0
    %1525 = vmatmul.mubr.bf16.gmra.mxu0 %v1490
    %v1526 = vpop.f32.mrf.mxu0
    %v1527 = vadd.f32 0.0, %v1526
    %v1528 = vpop.f32.mrf.mxu0
    %v1529 = vpop.f32.mrf.mxu0
    %v1530 = vpop.f32.mrf.mxu0
    %1531 = vdwg.mxu0
    %v1532 = vadd.f32 %v1480, %v1527
    %v1533 = vxor.u32 %v1532, 2147483648
    %v1534 = vmul.f32 %v1533, 1.442695
    %v1535 = vpow.pop %v1534
    %v1536 = vadd.f32 %v1535, 1.0
    %v1537 = vrcp.pop %v1536
    %v1538 = vmul.f32 1.0, %v1537
    %v1539 = vtanh.pop %v1532
    %v1540 = vmul.f32 %v1538, %v1366
    %1542 = vrot.lane.b32.xlu0 %v1539, 64
    %v1543 = vpop.permute.xlu0 %1542
    %v1545 = vmul.f32 %v1538, %v1543
    %1547 = vrot.lane.b32.xlu0 %v1545, 32
    %v1548 = vpop.permute.xlu0 %1547
    %v1550 = vadd.f32 %v1540, %v1548
    %v1551 = vtanh.pop %v1550
    %1553 = vrot.lane.b32.xlu0 %v1551, 64
    %v1554 = vpop.permute.xlu0 %1553
    %v1556 = vmul.f32 %v1538, %v1554
    %v1557 = vpack.c.bf16 %v1444, %v1444
    %1559 = vrot.lane.b32.xlu0 %v1557, 32
    %v1560 = vpop.permute.xlu0 %1559
    %v1562 = vsel %vm177, %v1560, 0
    %1564 = vmatprep.subr.bf16.mxu0 0
    %1565 = vmatpush1.bf16.msra.mxu0 0
    %1566 = vmatprep.subr.bf16.mxu0 0
    %1567 = vmatpush1.bf16.msra.mxu0 0
    %1568 = vmatprep.subr.bf16.mxu0 0
    %1569 = vmatpush1.bf16.msra.mxu0 0
    %1570 = vmatprep.subr.bf16.mxu0 0
    %1571 = vmatpush1.bf16.msra.mxu0 0
    %1572 = vmatprep.subr.bf16.mxu0 0
    %1573 = vmatpush1.bf16.msra.mxu0 0
    %1574 = vmatprep.subr.bf16.mxu0 0
    %1575 = vmatpush1.bf16.msra.mxu0 0
    %1576 = vmatprep.subr.bf16.mxu0 0
    %1577 = vmatpush1.bf16.msra.mxu0 %v333
    %1578 = vmatprep.subr.bf16.mxu0 0
    %1579 = vmatpush1.bf16.msra.mxu0 %v332
    %1580 = vmatprep.subr.bf16.mxu0 0
    %1581 = vmatpush2.bf16.msra.mxu0 0
    %1582 = vmatprep.subr.bf16.mxu0 0
    %1583 = vmatpush2.bf16.msra.mxu0 0
    %1584 = vmatprep.subr.bf16.mxu0 0
    %1585 = vmatpush2.bf16.msra.mxu0 0
    %1586 = vmatprep.subr.bf16.mxu0 0
    %1587 = vmatpush2.bf16.msra.mxu0 0
    %1588 = vmatprep.subr.bf16.mxu0 0
    %1589 = vmatpush2.bf16.msra.mxu0 0
    %1590 = vmatprep.subr.bf16.mxu0 0
    %1591 = vmatpush2.bf16.msra.mxu0 0
    %1592 = vmatprep.subr.bf16.mxu0 0
    %1593 = vmatpush2.bf16.msra.mxu0 0
    %1594 = vmatprep.subr.bf16.mxu0 0
    %1595 = vmatpush2.bf16.msra.mxu0 0
    %1596 = vmatprep.mubr.bf16.mxu0 0
    %1597 = vmatmul.mubr.bf16.gmra.mxu0 %v1562
    %v1598 = vpop.f32.mrf.mxu0
    %v1599 = vadd.f32 %v322, %v1598
    %v1600 = vpop.f32.mrf.mxu0
    %v1601 = vpop.f32.mrf.mxu0
    %v1602 = vpop.f32.mrf.mxu0
    %1603 = vdwg.mxu0
    %v1604 = vpack.c.bf16 %v1556, %v1556
    %1606 = vrot.lane.b32.xlu0 %v1604, 32
    %v1607 = vpop.permute.xlu0 %1606
    %v1609 = vsel %vm177, %v1607, 0
    %1611 = vmatprep.subr.bf16.mxu0 0
    %1612 = vmatpush1.bf16.msra.mxu0 0
    %1613 = vmatprep.subr.bf16.mxu0 0
    %1614 = vmatpush1.bf16.msra.mxu0 0
    %1615 = vmatprep.subr.bf16.mxu0 0
    %1616 = vmatpush1.bf16.msra.mxu0 0
    %1617 = vmatprep.subr.bf16.mxu0 0
    %1618 = vmatpush1.bf16.msra.mxu0 0
    %1619 = vmatprep.subr.bf16.mxu0 0
    %1620 = vmatpush1.bf16.msra.mxu0 0
    %1621 = vmatprep.subr.bf16.mxu0 0
    %1622 = vmatpush1.bf16.msra.mxu0 0
    %1623 = vmatprep.subr.bf16.mxu0 0
    %1624 = vmatpush1.bf16.msra.mxu0 %v385
    %1625 = vmatprep.subr.bf16.mxu0 0
    %1626 = vmatpush1.bf16.msra.mxu0 %v384
    %1627 = vmatprep.subr.bf16.mxu0 0
    %1628 = vmatpush2.bf16.msra.mxu0 0
    %1629 = vmatprep.subr.bf16.mxu0 0
    %1630 = vmatpush2.bf16.msra.mxu0 0
    %1631 = vmatprep.subr.bf16.mxu0 0
    %1632 = vmatpush2.bf16.msra.mxu0 0
    %1633 = vmatprep.subr.bf16.mxu0 0
    %1634 = vmatpush2.bf16.msra.mxu0 0
    %1635 = vmatprep.subr.bf16.mxu0 0
    %1636 = vmatpush2.bf16.msra.mxu0 0
    %1637 = vmatprep.subr.bf16.mxu0 0
    %1638 = vmatpush2.bf16.msra.mxu0 0
    %1639 = vmatprep.subr.bf16.mxu0 0
    %1640 = vmatpush2.bf16.msra.mxu0 0
    %1641 = vmatprep.subr.bf16.mxu0 0
    %1642 = vmatpush2.bf16.msra.mxu0 0
    %1643 = vmatprep.mubr.bf16.mxu0 0
    %1644 = vmatmul.mubr.bf16.gmra.mxu0 %v1609
    %v1645 = vpop.f32.mrf.mxu0
    %v1646 = vadd.f32 0.0, %v1645
    %v1647 = vpop.f32.mrf.mxu0
    %v1648 = vpop.f32.mrf.mxu0
    %v1649 = vpop.f32.mrf.mxu0
    %1650 = vdwg.mxu0
    %v1651 = vadd.f32 %v1599, %v1646
    %v1652 = vxor.u32 %v1651, 2147483648
    %v1653 = vmul.f32 %v1652, 1.442695
    %v1654 = vpow.pop %v1653
    %v1655 = vadd.f32 %v1654, 1.0
    %v1656 = vrcp.pop %v1655
    %v1657 = vmul.f32 1.0, %v1656
    %v1658 = vtanh.pop %v1651
    %v1659 = vmul.f32 %v1657, %v1550
    %1661 = vrot.lane.b32.xlu0 %v1658, 64
    %v1662 = vpop.permute.xlu0 %1661
    %v1664 = vmul.f32 %v1657, %v1662
    %1666 = vrot.lane.b32.xlu0 %v1664, 32
    %v1667 = vpop.permute.xlu0 %1666
    %v1669 = vadd.f32 %v1659, %v1667
    %v1670 = vtanh.pop %v1669
    %1672 = vrot.lane.b32.xlu0 %v1670, 64
    %v1673 = vpop.permute.xlu0 %1672
    %v1675 = vmul.f32 %v1657, %v1673
    %v1676 = vpack.c.bf16 %v1675, %v1675
    %v1677 = vld [vmem:[%s7] sm:$0xf]
    %v1678 = vld [vmem:[%s7 + $0x4] sm:$0xf]
    %v1679 = vld [vmem:[%s7 + $0x8] sm:$0xf]
    %v1680 = vld [vmem:[%s7 + $0xc] sm:$0xf]
    %v1681 = vld [vmem:[%s8] sm:$0x1]
    %v1683 = vlaneseq
    %v1684 = vshrl.u32 %v1683, 7
    %v1685 = vsub.s32 0, %v1684
    %v1686 = vrot.slane %v1681, %v1685
    %1689 = vrot.lane.b32.xlu0 %v1676, 32
    %v1690 = vpop.permute.xlu0 %1689
    %v1695 = vunpack.c.l.b16 %v1677
    %v1696 = vunpack.c.l.b16 %v1678
    %v1697 = vunpack.c.l.b16 %v1679
    %v1698 = vunpack.c.l.b16 %v1680
    %v1699 = vpack.c.b16 %v1696, %v1695
    %v1700 = vpack.c.b16 %v1698, %v1697
    %v1704 = vsel %vm177, %v1690, 0
    %1706 = vmatprep.subr.bf16.mxu0 0
    %1707 = vmatpush1.bf16.msra.mxu0 0
    %1708 = vmatprep.subr.bf16.mxu0 0
    %1709 = vmatpush1.bf16.msra.mxu0 0
    %1710 = vmatprep.subr.bf16.mxu0 0
    %1711 = vmatpush1.bf16.msra.mxu0 0
    %1712 = vmatprep.subr.bf16.mxu0 0
    %1713 = vmatpush1.bf16.msra.mxu0 0
    %1714 = vmatprep.subr.bf16.mxu0 0
    %1715 = vmatpush1.bf16.msra.mxu0 0
    %1716 = vmatprep.subr.bf16.mxu0 0
    %1717 = vmatpush1.bf16.msra.mxu0 0
    %1718 = vmatprep.subr.bf16.mxu0 0
    %1719 = vmatpush1.bf16.msra.mxu0 %v1700
    %1720 = vmatprep.subr.bf16.mxu0 0
    %1721 = vmatpush1.bf16.msra.mxu0 %v1699
    %1722 = vmatprep.subr.bf16.mxu0 0
    %1723 = vmatpush2.bf16.msra.mxu0 0
    %1724 = vmatprep.subr.bf16.mxu0 0
    %1725 = vmatpush2.bf16.msra.mxu0 0
    %1726 = vmatprep.subr.bf16.mxu0 0
    %1727 = vmatpush2.bf16.msra.mxu0 0
    %1728 = vmatprep.subr.bf16.mxu0 0
    %1729 = vmatpush2.bf16.msra.mxu0 0
    %1730 = vmatprep.subr.bf16.mxu0 0
    %1731 = vmatpush2.bf16.msra.mxu0 0
    %1732 = vmatprep.subr.bf16.mxu0 0
    %1733 = vmatpush2.bf16.msra.mxu0 0
    %1734 = vmatprep.subr.bf16.mxu0 0
    %1735 = vmatpush2.bf16.msra.mxu0 0
    %1736 = vmatprep.subr.bf16.mxu0 0
    %1737 = vmatpush2.bf16.msra.mxu0 0
    %1738 = vmatprep.mubr.bf16.mxu0 0
    %1739 = vmatmul.mubr.bf16.gmra.mxu0 %v1704
    %v1740 = vpop.f32.mrf.mxu0
    %v1741 = vadd.f32 %v1686, %v1740
    %v1742 = vpop.f32.mrf.mxu0
    %v1743 = vpop.f32.mrf.mxu0
    %v1744 = vpop.f32.mrf.mxu0
    %1745 = vdwg.mxu0
    %vm1746 = vcmask 97280
    %1747 = vst.msk [vmem:[#allocation2] sm:$0xff] %vm1746, %v1741
    // Predicated region
    $region38: #{tpu_custom_call.1} parent=1 // pred_check
      _
    $region39: #{tpu_custom_call.1} parent=1 // pred_check_branch
      %1749 = sbr.rel (0) target = $region41
    $region40: #{tpu_custom_call.1} parent=1 // pred_region
      %s1751 = ssub.s32 128, 128
      %1752 = vsyncadd [#allocation3], %s1751
      %s1754 = sshll.u32 [#allocation2], 4
      %s1755 = int_to_ptr.vmem [resolvable:$true] %s1754
      %1757 = dma.vmem_to_hbm [thread:$0]  %s1755, 128, %s9, [#allocation3]
    $region41: #{tpu_custom_call.1} parent=1 // pred_fallthru
      _
    // Predicated region
    $region42: #{tpu_custom_call.1} parent=1 // pred_check
      _
    $region43: #{tpu_custom_call.1} parent=1 // pred_check_branch
      %1759 = sbr.rel (0) target = $region45
    $region44: #{tpu_custom_call.1} parent=1 // pred_region
      %1760 = dma.done [#allocation3], 128
    $region45: #{tpu_custom_call.1} parent=1 // pred_fallthru
      _
    %1761 = vsyncpa [#allocation3], 1

</llo_original>
